<compile_context>
chip_gen: v5e
topology: v5e:2x2
jax: 0.10.0
libtpu: 0.0.40
codegen_flags: <defaults>
</compile_context>

<pallas_src>
import functools

import jax
import jax.numpy as jnp
from jax.experimental import pallas as pl
from jax.experimental.pallas import tpu as pltpu

_LANE = 128
_SUBLANE = 8
_MIB = 1 << 20


def _round_up(n, m):
    return ((n + m - 1) // m) * m


def _mlp_kernel(x_ref, *refs):
    """Whole-MLP kernel for one batch tile.

    refs = (w0, b0, w1, b1, ..., wL, bL, out_ref).
    SiLU is applied after every layer except the last (matches FCN).
    Inputs/weights arrive already in the compute dtype (bf16 by default);
    biases arrive in f32.
    """
    out_ref = refs[-1]
    param_refs = refs[:-1]
    n_layers = len(param_refs) // 2

    h = x_ref[...]                                   # compute dtype (bf16)
    for l in range(n_layers):
        w = param_refs[2 * l][...]                   # [in_p, out_p], bf16
        b = param_refs[2 * l + 1][...]               # [1, out_p],  f32
        # bf16 operands, f32 accumulation on the MXU; bias added in f32.
        y = jnp.dot(h, w, preferred_element_type=jnp.float32) + b
        if l < n_layers - 1:
            # SiLU in f32; sigmoid lowers to the EUP (its own VLIW slot).
            y = y * jax.nn.sigmoid(y)
            h = y.astype(w.dtype)
        else:
            out_ref[...] = y.astype(out_ref.dtype)


def _estimate_vmem_bytes(bt, in_p, layer_out_dims, out_p,
                         x_itemsize, w_itemsize, out_itemsize):
    """Rough VMEM footprint: single-buffered weights + double-buffered
    activation tiles + f32 intermediates."""
    w_bytes = 0
    prev = in_p
    for d in layer_out_dims:
        w_bytes += prev * d * w_itemsize          # weight, single-buffered
        w_bytes += d * 4                          # f32 bias
        prev = d
    act_in = 2 * bt * in_p * x_itemsize           # double-buffered input tile
    act_out = 2 * bt * out_p * out_itemsize       # double-buffered output tile
    inter = 2 * bt * max(layer_out_dims) * 4      # f32 intermediates (rough)
    return w_bytes + act_in + act_out + inter


def fcn_forward(x, params, *, batch_tile=256, compute_dtype=jnp.bfloat16,
                lane_multiple=_LANE, vmem_limit_bytes=None):
    """Run the FCN forward pass with a single pallas_call.

    x:      [B, input_dim] float32
    params: list of (W, b) with W: [in, out], b: [out]
    """
    B, in_dim = x.shape
    out_dim = params[-1][0].shape[1]
    orig_dtype = x.dtype

    # ---- lane-dense feature padding -------------------------------------
    in_p = _round_up(in_dim, lane_multiple)
    x_p = x if in_p == in_dim else jnp.pad(x, ((0, 0), (0, in_p - in_dim)))
    x_p = x_p.astype(compute_dtype)                # ship bf16 activations

    padded_params = []
    layer_out_dims = []
    prev = in_p
    for (w, b) in params:
        fi, fo = w.shape
        fo_p = _round_up(fo, lane_multiple)
        w_p = jnp.pad(w, ((0, prev - fi), (0, fo_p - fo))).astype(compute_dtype)
        b_p = jnp.pad(b, (0, fo_p - fo)).reshape(1, fo_p).astype(jnp.float32)
        padded_params.append((w_p, b_p))
        layer_out_dims.append(fo_p)
        prev = fo_p
    out_p = prev

    # ---- batch tiling -----------------------------------------------------
    # Small batches: collapse to a single grid step (per-step overhead dwarfs
    # the MXU work at these sizes). Large batches: big M tiles; weights are
    # resident so only bt x hidden intermediates grow with bt.
    # On v7x, prefer bt such that the grid length is even (2 TensorCores).
    b_min = _round_up(B, _SUBLANE)
    if b_min <= max(batch_tile, 512):
        bt = b_min
    else:
        bt = _round_up(batch_tile, _SUBLANE)
    B_p = _round_up(B, bt)
    if B_p != B:
        x_p = jnp.pad(x_p, ((0, B_p - B), (0, 0)))
    grid = (B_p // bt,)

    # ---- BlockSpecs --------------------------------------------------------
    in_specs = [pl.BlockSpec((bt, in_p), lambda i: (i, 0))]
    flat_params = []
    for (w_p, b_p) in padded_params:
        flat_params.extend([w_p, b_p])
        # Constant index_map -> fetched into VMEM once and reused for every
        # batch tile; Buffered(1) -> no second pipeline buffer for constants.
        in_specs.append(pl.BlockSpec(w_p.shape, lambda i: (0, 0),
                                     pipeline_mode=pl.Buffered(1)))
        in_specs.append(pl.BlockSpec(b_p.shape, lambda i: (0, 0),
                                     pipeline_mode=pl.Buffered(1)))

    out_spec = pl.BlockSpec((bt, out_p), lambda i: (i, 0))

    # ---- VMEM budget -------------------------------------------------------
    if vmem_limit_bytes is None:
        est = _estimate_vmem_bytes(
            bt, in_p, layer_out_dims, out_p,
            x_itemsize=jnp.dtype(compute_dtype).itemsize,
            w_itemsize=jnp.dtype(compute_dtype).itemsize,
            out_itemsize=jnp.dtype(orig_dtype).itemsize)
        # 1.5x margin + slack; floor at the v5e default, cap at 64 MiB so the
        # setting is valid on every generation (raise toward 128 MiB by hand
        # on v5e/v6e for very large hidden sizes).
        vmem_limit_bytes = min(64 * _MIB,
                               max(16 * _MIB, int(est * 1.5) + 4 * _MIB))

    out_padded = pl.pallas_call(
        _mlp_kernel,
        out_shape=jax.ShapeDtypeStruct((B_p, out_p), orig_dtype),
        grid=grid,
        in_specs=in_specs,
        out_specs=out_spec,
        compiler_params=pltpu.CompilerParams(
            dimension_semantics=("parallel",),
            vmem_limit_bytes=vmem_limit_bytes),
    )(x_p, *flat_params)

    return out_padded[:B, :out_dim]


def init_fcn_params(key, input_dim, output_dim, mlp_layer_number, mlp_hidden_size):
    """Deterministic init mimicking nn.Linear's U(-1/sqrt(fan_in), 1/sqrt(fan_in)).

    Returns list of (W, b) with W stored as [in, out] (torch weight transposed).
    """
    dims = [input_dim] + [mlp_hidden_size] * mlp_layer_number + [output_dim]
    params = []
    for i in range(len(dims) - 1):
        fan_in, fan_out = dims[i], dims[i + 1]
        key, kw, kb = jax.random.split(key, 3)
        bound = 1.0 / jnp.sqrt(jnp.float32(fan_in))
        w = jax.random.uniform(kw, (fan_in, fan_out), jnp.float32, -bound, bound)
        b = jax.random.uniform(kb, (fan_out,), jnp.float32, -bound, bound)
        params.append((w, b))
    return params


def fcn_reference(x, params, compute_dtype=jnp.float32):
    """Pure-JAX reference mirroring the kernel's precision choices."""
    h = x.astype(compute_dtype)
    n = len(params)
    for l, (w, b) in enumerate(params):
        y = jnp.dot(h, w.astype(compute_dtype),
                    preferred_element_type=jnp.float32) + b
        if l < n - 1:
            y = y * jax.nn.sigmoid(y)
            h = y.astype(compute_dtype)
        else:
            h = y
    return h.astype(x.dtype)


if __name__ == "__main__":
    # Shapes consistent with FCN(input_dim, output_dim, mlp_layer_number, hidden).
    # batch=256 collapses to a single grid step (bt = 256): for this tiny model
    # each 256x128 @ 128x128 matmul is tens of ns of MXU work, so minimizing
    # grid steps removes almost all of the pipeline overhead.
    input_dim = 16
    output_dim = 8
    mlp_layer_number = 2
    mlp_hidden_size = 32
    batch = 256

    key = jax.random.PRNGKey(0)
    key, kx = jax.random.split(key)
    x = jax.random.normal(kx, (batch, input_dim), jnp.float32)

    params = init_fcn_params(key, input_dim, output_dim,
                             mlp_layer_number, mlp_hidden_size)

    out = fcn_forward(x, params, compute_dtype=jnp.bfloat16)
    out = jax.block_until_ready(out)

    ref_bf16 = fcn_reference(x, params, compute_dtype=jnp.bfloat16)
    ref_f32 = fcn_reference(x, params, compute_dtype=jnp.float32)

    assert out.shape == (batch, output_dim)
    assert jnp.allclose(out, ref_bf16, atol=2e-2, rtol=2e-2)
    assert jnp.allclose(out, ref_f32, atol=5e-2, rtol=5e-2)

    print("KERNEL_OK")
</pallas_src>

<mosaic_0001>
module attributes {stable_mosaic.version = 11 : i64} {
  func.func @_mlp_kernel(%arg0: i32, %arg1: memref<256x128xbf16, #tpu.memory_space<vmem>>, %arg2: memref<128x128xbf16, #tpu.memory_space<vmem>>, %arg3: memref<1x128xf32, #tpu.memory_space<vmem>>, %arg4: memref<128x128xbf16, #tpu.memory_space<vmem>>, %arg5: memref<1x128xf32, #tpu.memory_space<vmem>>, %arg6: memref<128x128xbf16, #tpu.memory_space<vmem>>, %arg7: memref<1x128xf32, #tpu.memory_space<vmem>>, %arg8: memref<256x128xf32, #tpu.memory_space<vmem>>) attributes {dimension_semantics = [#tpu.dimension_semantics<parallel>], iteration_bounds = array<i64: 1>, scalar_prefetch = 0 : i64, scratch_operands = 0 : i64, tpu.core_type = #tpu.core_type<tc>, window_params = [{transform_indices = @transform_0, window_bounds = array<i64: 256, 128>}, {pipeline_mode = #tpu.pipeline_mode<synchronous>, transform_indices = @transform_1, window_bounds = array<i64: 128, 128>}, {pipeline_mode = #tpu.pipeline_mode<synchronous>, transform_indices = @transform_2, window_bounds = array<i64: 1, 128>}, {pipeline_mode = #tpu.pipeline_mode<synchronous>, transform_indices = @transform_3, window_bounds = array<i64: 128, 128>}, {pipeline_mode = #tpu.pipeline_mode<synchronous>, transform_indices = @transform_4, window_bounds = array<i64: 1, 128>}, {pipeline_mode = #tpu.pipeline_mode<synchronous>, transform_indices = @transform_5, window_bounds = array<i64: 128, 128>}, {pipeline_mode = #tpu.pipeline_mode<synchronous>, transform_indices = @transform_6, window_bounds = array<i64: 1, 128>}, {transform_indices = @transform_7, window_bounds = array<i64: 256, 128>}]} {
    %c0 = arith.constant 0 : index
    %c0_0 = arith.constant 0 : index
    %0 = vector.load %arg1[%c0, %c0_0] : memref<256x128xbf16, #tpu.memory_space<vmem>>, vector<256x128xbf16>
    %c0_1 = arith.constant 0 : index
    %c0_2 = arith.constant 0 : index
    %1 = vector.load %arg2[%c0_1, %c0_2] : memref<128x128xbf16, #tpu.memory_space<vmem>>, vector<128x128xbf16>
    %c0_3 = arith.constant 0 : index
    %c0_4 = arith.constant 0 : index
    %2 = vector.load %arg3[%c0_3, %c0_4] : memref<1x128xf32, #tpu.memory_space<vmem>>, vector<1x128xf32>
    %cst = arith.constant dense<0.000000e+00> : vector<256x128xf32>
    %3 = tpu.matmul %0, %1, %cst {dimension_numbers = #tpu.dot_dimension_numbers<[1], [0], [0], [1], [0, 0, 1, 1], [], []>} : vector<256x128xbf16>, vector<128x128xbf16>, vector<256x128xf32> -> vector<256x128xf32>
    %4 = vector.broadcast %2 : vector<1x128xf32> to vector<256x128xf32>
    %5 = arith.addf %3, %4 : vector<256x128xf32>
    %6 = arith.negf %5 : vector<256x128xf32>
    %7 = math.exp %6 : vector<256x128xf32>
    %cst_5 = arith.constant 1.000000e+00 : f32
    %8 = vector.broadcast %cst_5 : f32 to vector<256x128xf32>
    %9 = arith.addf %8, %7 : vector<256x128xf32>
    %10 = arith.divf %8, %9 : vector<256x128xf32>
    %11 = arith.mulf %5, %10 : vector<256x128xf32>
    %12 = arith.truncf %11 : vector<256x128xf32> to vector<256x128xbf16>
    %c0_6 = arith.constant 0 : index
    %c0_7 = arith.constant 0 : index
    %13 = vector.load %arg4[%c0_6, %c0_7] : memref<128x128xbf16, #tpu.memory_space<vmem>>, vector<128x128xbf16>
    %c0_8 = arith.constant 0 : index
    %c0_9 = arith.constant 0 : index
    %14 = vector.load %arg5[%c0_8, %c0_9] : memref<1x128xf32, #tpu.memory_space<vmem>>, vector<1x128xf32>
    %cst_10 = arith.constant dense<0.000000e+00> : vector<256x128xf32>
    %15 = tpu.matmul %12, %13, %cst_10 {dimension_numbers = #tpu.dot_dimension_numbers<[1], [0], [0], [1], [0, 0, 1, 1], [], []>} : vector<256x128xbf16>, vector<128x128xbf16>, vector<256x128xf32> -> vector<256x128xf32>
    %16 = vector.broadcast %14 : vector<1x128xf32> to vector<256x128xf32>
    %17 = arith.addf %15, %16 : vector<256x128xf32>
    %18 = arith.negf %17 : vector<256x128xf32>
    %19 = math.exp %18 : vector<256x128xf32>
    %cst_11 = arith.constant 1.000000e+00 : f32
    %20 = vector.broadcast %cst_11 : f32 to vector<256x128xf32>
    %21 = arith.addf %20, %19 : vector<256x128xf32>
    %22 = arith.divf %20, %21 : vector<256x128xf32>
    %23 = arith.mulf %17, %22 : vector<256x128xf32>
    %24 = arith.truncf %23 : vector<256x128xf32> to vector<256x128xbf16>
    %c0_12 = arith.constant 0 : index
    %c0_13 = arith.constant 0 : index
    %25 = vector.load %arg6[%c0_12, %c0_13] : memref<128x128xbf16, #tpu.memory_space<vmem>>, vector<128x128xbf16>
    %c0_14 = arith.constant 0 : index
    %c0_15 = arith.constant 0 : index
    %26 = vector.load %arg7[%c0_14, %c0_15] : memref<1x128xf32, #tpu.memory_space<vmem>>, vector<1x128xf32>
    %cst_16 = arith.constant dense<0.000000e+00> : vector<256x128xf32>
    %27 = tpu.matmul %24, %25, %cst_16 {dimension_numbers = #tpu.dot_dimension_numbers<[1], [0], [0], [1], [0, 0, 1, 1], [], []>} : vector<256x128xbf16>, vector<128x128xbf16>, vector<256x128xf32> -> vector<256x128xf32>
    %28 = vector.broadcast %26 : vector<1x128xf32> to vector<256x128xf32>
    %29 = arith.addf %27, %28 : vector<256x128xf32>
    %c0_17 = arith.constant 0 : index
    %c0_18 = arith.constant 0 : index
    %30 = vector.load %arg8[%c0_17, %c0_18] : memref<256x128xf32, #tpu.memory_space<vmem>>, vector<256x128xf32>
    tpu.vector_store %arg8[%c0_17, %c0_18], %29 {strides = array<i32>} : memref<256x128xf32, #tpu.memory_space<vmem>>, vector<256x128xf32>,
    return
  }
  func.func @transform_0(%arg0: i32) -> (i32, i32) {
    %c0_i32 = arith.constant 0 : i32
    %c0_i32_0 = arith.constant 0 : i32
    return %arg0, %c0_i32 : i32, i32
  }
  func.func @transform_1(%arg0: i32) -> (i32, i32) {
    %c0_i32 = arith.constant 0 : i32
    %c0_i32_0 = arith.constant 0 : i32
    %c0_i32_1 = arith.constant 0 : i32
    return %c0_i32, %c0_i32_0 : i32, i32
  }
  func.func @transform_2(%arg0: i32) -> (i32, i32) {
    %c0_i32 = arith.constant 0 : i32
    %c0_i32_0 = arith.constant 0 : i32
    %c0_i32_1 = arith.constant 0 : i32
    return %c0_i32, %c0_i32_0 : i32, i32
  }
  func.func @transform_3(%arg0: i32) -> (i32, i32) {
    %c0_i32 = arith.constant 0 : i32
    %c0_i32_0 = arith.constant 0 : i32
    %c0_i32_1 = arith.constant 0 : i32
    return %c0_i32, %c0_i32_0 : i32, i32
  }
  func.func @transform_4(%arg0: i32) -> (i32, i32) {
    %c0_i32 = arith.constant 0 : i32
    %c0_i32_0 = arith.constant 0 : i32
    %c0_i32_1 = arith.constant 0 : i32
    return %c0_i32, %c0_i32_0 : i32, i32
  }
  func.func @transform_5(%arg0: i32) -> (i32, i32) {
    %c0_i32 = arith.constant 0 : i32
    %c0_i32_0 = arith.constant 0 : i32
    %c0_i32_1 = arith.constant 0 : i32
    return %c0_i32, %c0_i32_0 : i32, i32
  }
  func.func @transform_6(%arg0: i32) -> (i32, i32) {
    %c0_i32 = arith.constant 0 : i32
    %c0_i32_0 = arith.constant 0 : i32
    %c0_i32_1 = arith.constant 0 : i32
    return %c0_i32, %c0_i32_0 : i32, i32
  }
  func.func @transform_7(%arg0: i32) -> (i32, i32) {
    %c0_i32 = arith.constant 0 : i32
    %c0_i32_0 = arith.constant 0 : i32
    return %arg0, %c0_i32 : i32, i32
  }
}

</mosaic_0001>

<llo_original>
// kernel: tpu_custom_call.1
$region0: #{tpu_custom_call.1}
  #allocation0 [shape = 'u32[]', space=smem, size = 0x4, offset = 0x4, fixed_abs, tag = 'smem constant byte address 0x4 - core index']
  #allocation1 [shape = 'u32[72,128]{1,0:T(1,128)}', space=vmem, size = 0x9000, scoped, tag = 'internal scratch']
  %s0 = inlined_call_operand.hbm [shape: bf16[256,128], index: 0, kind: input, shape index: {}]
  %s1 = inlined_call_operand.hbm [shape: bf16[128,128], index: 1, kind: input, shape index: {}]
  %s2 = inlined_call_operand.vmem [shape: f32[1,128], index: 2, kind: input, shape index: {}]
  %s3 = inlined_call_operand.hbm [shape: bf16[128,128], index: 3, kind: input, shape index: {}]
  %s4 = inlined_call_operand.vmem [shape: f32[1,128], index: 4, kind: input, shape index: {}]
  %s5 = inlined_call_operand.hbm [shape: bf16[128,128], index: 5, kind: input, shape index: {}]
  %s6 = inlined_call_operand.vmem [shape: f32[1,128], index: 6, kind: input, shape index: {}]
  %s7 = inlined_call_operand.hbm [shape: f32[256,128], index: 7, kind: output, shape index: {}]
  %s8 = sld [smem:[#allocation0]]
  $region54: #{tpu_custom_call.1} parent=0
    _
  %s10 = ssub.s32 1, %s8
  %s11 = scalar_select 0, %s10, %s8
  $region1: #{tpu_custom_call.1} parent=0
    #allocation2 [shape = 'u8[65536]{0}', space=vmem, size = 0x10000, scoped, tag = 'input window, operand 0, single buffered']
    #allocation3 [shape = 's32[1]{0}', space=sflag, size = 0x4, scoped, tag = 'scoped memory for tpu_custom_call.1']
    #allocation4 [shape = 's32[1]{0}', space=sflag, size = 0x4, scoped, tag = 'scoped memory for tpu_custom_call.1']
    #allocation5 [shape = 'u8[32768]{0}', space=vmem, size = 0x8000, scoped, tag = 'input window, operand 1, single buffered']
    #allocation6 [shape = 's32[1]{0}', space=sflag, size = 0x4, scoped, tag = 'scoped memory for tpu_custom_call.1']
    #allocation7 [shape = 'u8[32768]{0}', space=vmem, size = 0x8000, scoped, tag = 'input window, operand 3, single buffered']
    #allocation8 [shape = 'u8[32768]{0}', space=vmem, size = 0x8000, scoped, tag = 'input window, operand 5, single buffered']
    #allocation9 [shape = 's32[1]{0}', space=sflag, size = 0x4, scoped, tag = 'scoped memory for tpu_custom_call.1']
    #allocation10 [shape = 'u8[131072]{0}', space=vmem, size = 0x20000, scoped, tag = 'output window, operand 0, single buffered']
    %12 = vsyncpa [#allocation3], 0
    %13 = vsyncpa [#allocation6], 0
    %14 = vsyncpa [#allocation9], 0
    %15 = vsyncpa [#allocation4], 0
    // Predicated region
    $region2: #{tpu_custom_call.1} parent=1 // pred_check
      _
    $region3: #{tpu_custom_call.1} parent=1 // pred_check_branch
      %17 = sbr.rel (0) target = $region5
    $region4: #{tpu_custom_call.1} parent=1 // pred_region
      %19 = vsyncadd [#allocation3], 0
      %s20 = sshll.u32 %s0, 4
      %s21 = int_to_ptr.hbm [resolvable:$true] %s20
      %s22 = sshll.u32 [#allocation2], 4
      %s23 = int_to_ptr.vmem [resolvable:$true] %s22
      %28 = dma.hbm_to_vmem [thread:$0]  %s21, 2048, %s23, [#allocation3], 64, 64, 4
    $region5: #{tpu_custom_call.1} parent=1 // pred_fallthru
      _
    // Predicated region
    $region6: #{tpu_custom_call.1} parent=1 // pred_check
      _
    $region7: #{tpu_custom_call.1} parent=1 // pred_check_branch
      %30 = sbr.rel (0) target = $region9
    $region8: #{tpu_custom_call.1} parent=1 // pred_region
      %32 = vsyncadd [#allocation6], 0
      %s33 = sshll.u32 %s1, 4
      %s34 = int_to_ptr.hbm [resolvable:$true] %s33
      %s35 = sshll.u32 [#allocation5], 4
      %s36 = int_to_ptr.vmem [resolvable:$true] %s35
      %41 = dma.hbm_to_vmem [thread:$0]  %s34, 1024, %s36, [#allocation6], 64, 64, 4
    $region9: #{tpu_custom_call.1} parent=1 // pred_fallthru
      _
    // Predicated region
    $region10: #{tpu_custom_call.1} parent=1 // pred_check
      _
    $region11: #{tpu_custom_call.1} parent=1 // pred_check_branch
      %43 = sbr.rel (0) target = $region13
    $region12: #{tpu_custom_call.1} parent=1 // pred_region
      _
    $region13: #{tpu_custom_call.1} parent=1 // pred_fallthru
      _
    // Predicated region
    $region14: #{tpu_custom_call.1} parent=1 // pred_check
      _
    $region15: #{tpu_custom_call.1} parent=1 // pred_check_branch
      %45 = sbr.rel (0) target = $region17
    $region16: #{tpu_custom_call.1} parent=1 // pred_region
      %47 = vsyncadd [#allocation6], 0
      %s48 = sshll.u32 %s3, 4
      %s49 = int_to_ptr.hbm [resolvable:$true] %s48
      %s50 = sshll.u32 [#allocation7], 4
      %s51 = int_to_ptr.vmem [resolvable:$true] %s50
      %56 = dma.hbm_to_vmem [thread:$0]  %s49, 1024, %s51, [#allocation6], 64, 64, 4
    $region17: #{tpu_custom_call.1} parent=1 // pred_fallthru
      _
    // Predicated region
    $region18: #{tpu_custom_call.1} parent=1 // pred_check
      _
    $region19: #{tpu_custom_call.1} parent=1 // pred_check_branch
      %58 = sbr.rel (0) target = $region21
    $region20: #{tpu_custom_call.1} parent=1 // pred_region
      _
    $region21: #{tpu_custom_call.1} parent=1 // pred_fallthru
      _
    // Predicated region
    $region22: #{tpu_custom_call.1} parent=1 // pred_check
      _
    $region23: #{tpu_custom_call.1} parent=1 // pred_check_branch
      %60 = sbr.rel (0) target = $region25
    $region24: #{tpu_custom_call.1} parent=1 // pred_region
      %62 = vsyncadd [#allocation9], 0
      %s63 = sshll.u32 %s5, 4
      %s64 = int_to_ptr.hbm [resolvable:$true] %s63
      %s65 = sshll.u32 [#allocation8], 4
      %s66 = int_to_ptr.vmem [resolvable:$true] %s65
      %71 = dma.hbm_to_vmem [thread:$0]  %s64, 1024, %s66, [#allocation9], 64, 64, 4
    $region25: #{tpu_custom_call.1} parent=1 // pred_fallthru
      _
    // Predicated region
    $region26: #{tpu_custom_call.1} parent=1 // pred_check
      _
    $region27: #{tpu_custom_call.1} parent=1 // pred_check_branch
      %73 = sbr.rel (0) target = $region29
    $region28: #{tpu_custom_call.1} parent=1 // pred_region
      _
    $region29: #{tpu_custom_call.1} parent=1 // pred_fallthru
      _
    // Predicated region
    $region30: #{tpu_custom_call.1} parent=1 // pred_check
      _
    $region31: #{tpu_custom_call.1} parent=1 // pred_check_branch
      %75 = sbr.rel (0) target = $region33
    $region32: #{tpu_custom_call.1} parent=1 // pred_region
      %77 = dma.done [#allocation3], 2048
    $region33: #{tpu_custom_call.1} parent=1 // pred_fallthru
      _
    // Predicated region
    $region34: #{tpu_custom_call.1} parent=1 // pred_check
      _
    $region35: #{tpu_custom_call.1} parent=1 // pred_check_branch
      %79 = sbr.rel (0) target = $region37
    $region36: #{tpu_custom_call.1} parent=1 // pred_region
      %81 = dma.done [#allocation6], 1024
    $region37: #{tpu_custom_call.1} parent=1 // pred_fallthru
      _
    // Predicated region
    $region38: #{tpu_custom_call.1} parent=1 // pred_check
      _
    $region39: #{tpu_custom_call.1} parent=1 // pred_check_branch
      %83 = sbr.rel (0) target = $region41
    $region40: #{tpu_custom_call.1} parent=1 // pred_region
      %85 = dma.done [#allocation6], 1024
    $region41: #{tpu_custom_call.1} parent=1 // pred_fallthru
      _
    // Predicated region
    $region42: #{tpu_custom_call.1} parent=1 // pred_check
      _
    $region43: #{tpu_custom_call.1} parent=1 // pred_check_branch
      %87 = sbr.rel (0) target = $region45
    $region44: #{tpu_custom_call.1} parent=1 // pred_region
      %89 = dma.done [#allocation9], 1024
    $region45: #{tpu_custom_call.1} parent=1 // pred_fallthru
      _
    %v90 = vld [vmem:[#allocation2] sm:$0xf]
    %v91 = vld [vmem:[#allocation2 + $0x4] sm:$0xf]
    %v92 = vld [vmem:[#allocation2 + $0x8] sm:$0xf]
    %v93 = vld [vmem:[#allocation2 + $0xc] sm:$0xf]
    %v94 = vld [vmem:[#allocation2 + $0x10] sm:$0xf]
    %v95 = vld [vmem:[#allocation2 + $0x14] sm:$0xf]
    %v96 = vld [vmem:[#allocation2 + $0x18] sm:$0xf]
    %v97 = vld [vmem:[#allocation2 + $0x1c] sm:$0xf]
    %v98 = vld [vmem:[#allocation2 + $0x20] sm:$0xf]
    %v99 = vld [vmem:[#allocation2 + $0x24] sm:$0xf]
    %v100 = vld [vmem:[#allocation2 + $0x28] sm:$0xf]
    %v101 = vld [vmem:[#allocation2 + $0x2c] sm:$0xf]
    %v102 = vld [vmem:[#allocation2 + $0x30] sm:$0xf]
    %v103 = vld [vmem:[#allocation2 + $0x34] sm:$0xf]
    %v104 = vld [vmem:[#allocation2 + $0x38] sm:$0xf]
    %v105 = vld [vmem:[#allocation2 + $0x3c] sm:$0xf]
    %v106 = vld [vmem:[#allocation2 + $0x40] sm:$0xf]
    %v107 = vld [vmem:[#allocation2 + $0x44] sm:$0xf]
    %v108 = vld [vmem:[#allocation2 + $0x48] sm:$0xf]
    %v109 = vld [vmem:[#allocation2 + $0x4c] sm:$0xf]
    %v110 = vld [vmem:[#allocation2 + $0x50] sm:$0xf]
    %v111 = vld [vmem:[#allocation2 + $0x54] sm:$0xf]
    %v112 = vld [vmem:[#allocation2 + $0x58] sm:$0xf]
    %v113 = vld [vmem:[#allocation2 + $0x5c] sm:$0xf]
    %v114 = vld [vmem:[#allocation2 + $0x60] sm:$0xf]
    %v115 = vld [vmem:[#allocation2 + $0x64] sm:$0xf]
    %v116 = vld [vmem:[#allocation2 + $0x68] sm:$0xf]
    %v117 = vld [vmem:[#allocation2 + $0x6c] sm:$0xf]
    %v118 = vld [vmem:[#allocation2 + $0x70] sm:$0xf]
    %v119 = vld [vmem:[#allocation2 + $0x74] sm:$0xf]
    %v120 = vld [vmem:[#allocation2 + $0x78] sm:$0xf]
    %v121 = vld [vmem:[#allocation2 + $0x7c] sm:$0xf]
    %v122 = vld [vmem:[#allocation5] sm:$0xf]
    %v123 = vld [vmem:[#allocation5 + $0x4] sm:$0xf]
    %v124 = vld [vmem:[#allocation5 + $0x8] sm:$0xf]
    %v125 = vld [vmem:[#allocation5 + $0xc] sm:$0xf]
    %v126 = vld [vmem:[#allocation5 + $0x10] sm:$0xf]
    %v127 = vld [vmem:[#allocation5 + $0x14] sm:$0xf]
    %v128 = vld [vmem:[#allocation5 + $0x18] sm:$0xf]
    %v129 = vld [vmem:[#allocation5 + $0x1c] sm:$0xf]
    %v130 = vld [vmem:[#allocation5 + $0x20] sm:$0xf]
    %v131 = vld [vmem:[#allocation5 + $0x24] sm:$0xf]
    %v132 = vld [vmem:[#allocation5 + $0x28] sm:$0xf]
    %v133 = vld [vmem:[#allocation5 + $0x2c] sm:$0xf]
    %v134 = vld [vmem:[#allocation5 + $0x30] sm:$0xf]
    %v135 = vld [vmem:[#allocation5 + $0x34] sm:$0xf]
    %v136 = vld [vmem:[#allocation5 + $0x38] sm:$0xf]
    %v137 = vld [vmem:[#allocation5 + $0x3c] sm:$0xf]
    %v138 = vld [vmem:[%s2] sm:$0x1]
    %v140 = vperm.slane %v138, 0
    %v174 = vunpack.c.l.b16 %v90
    %v175 = vunpack.c.l.b16 %v91
    %v176 = vunpack.c.l.b16 %v92
    %v177 = vunpack.c.l.b16 %v93
    %v178 = vunpack.c.l.b16 %v94
    %v179 = vunpack.c.l.b16 %v95
    %v180 = vunpack.c.l.b16 %v96
    %v181 = vunpack.c.l.b16 %v97
    %v182 = vunpack.c.l.b16 %v98
    %v183 = vunpack.c.l.b16 %v99
    %v184 = vunpack.c.l.b16 %v100
    %v185 = vunpack.c.l.b16 %v101
    %v186 = vunpack.c.l.b16 %v102
    %v187 = vunpack.c.l.b16 %v103
    %v188 = vunpack.c.l.b16 %v104
    %v189 = vunpack.c.l.b16 %v105
    %v190 = vunpack.c.l.b16 %v106
    %v191 = vunpack.c.l.b16 %v107
    %v192 = vunpack.c.l.b16 %v108
    %v193 = vunpack.c.l.b16 %v109
    %v194 = vunpack.c.l.b16 %v110
    %v195 = vunpack.c.l.b16 %v111
    %v196 = vunpack.c.l.b16 %v112
    %v197 = vunpack.c.l.b16 %v113
    %v198 = vunpack.c.l.b16 %v114
    %v199 = vunpack.c.l.b16 %v115
    %v200 = vunpack.c.l.b16 %v116
    %v201 = vunpack.c.l.b16 %v117
    %v202 = vunpack.c.l.b16 %v118
    %v203 = vunpack.c.l.b16 %v119
    %v204 = vunpack.c.l.b16 %v120
    %v205 = vunpack.c.l.b16 %v121
    %v206 = vpack.c.b16 %v175, %v174
    %v207 = vpack.c.b16 %v177, %v176
    %v208 = vpack.c.b16 %v179, %v178
    %v209 = vpack.c.b16 %v181, %v180
    %v210 = vpack.c.b16 %v183, %v182
    %v211 = vpack.c.b16 %v185, %v184
    %v212 = vpack.c.b16 %v187, %v186
    %v213 = vpack.c.b16 %v189, %v188
    %v214 = vpack.c.b16 %v191, %v190
    %v215 = vpack.c.b16 %v193, %v192
    %v216 = vpack.c.b16 %v195, %v194
    %v217 = vpack.c.b16 %v197, %v196
    %v218 = vpack.c.b16 %v199, %v198
    %v219 = vpack.c.b16 %v201, %v200
    %v220 = vpack.c.b16 %v203, %v202
    %v221 = vpack.c.b16 %v205, %v204
    %v254 = vunpack.c.l.b16 %v122
    %v255 = vunpack.c.l.b16 %v123
    %v256 = vunpack.c.l.b16 %v124
    %v257 = vunpack.c.l.b16 %v125
    %v258 = vunpack.c.l.b16 %v126
    %v259 = vunpack.c.l.b16 %v127
    %v260 = vunpack.c.l.b16 %v128
    %v261 = vunpack.c.l.b16 %v129
    %v262 = vunpack.c.l.b16 %v130
    %v263 = vunpack.c.l.b16 %v131
    %v264 = vunpack.c.l.b16 %v132
    %v265 = vunpack.c.l.b16 %v133
    %v266 = vunpack.c.l.b16 %v134
    %v267 = vunpack.c.l.b16 %v135
    %v268 = vunpack.c.l.b16 %v136
    %v269 = vunpack.c.l.b16 %v137
    %v270 = vpack.c.b16 %v255, %v254
    %v271 = vpack.c.b16 %v257, %v256
    %v272 = vpack.c.b16 %v259, %v258
    %v273 = vpack.c.b16 %v261, %v260
    %v274 = vpack.c.b16 %v263, %v262
    %v275 = vpack.c.b16 %v265, %v264
    %v276 = vpack.c.b16 %v267, %v266
    %v277 = vpack.c.b16 %v269, %v268
    %286 = vmatpush.bf16.msra.mxu0 %v277
    %287 = vmatpush.bf16.msra.mxu0 %v276
    %288 = vmatpush.bf16.msra.mxu0 %v275
    %289 = vmatpush.bf16.msra.mxu0 %v274
    %290 = vmatpush.bf16.msra.mxu0 %v273
    %291 = vmatpush.bf16.msra.mxu0 %v272
    %292 = vmatpush.bf16.msra.mxu0 %v271
    %293 = vmatpush.bf16.msra.mxu0 %v270
    %294 = vmatmul.bf16.gmra.mxu0 %v206
    %v295 = vpop.f32.mrf.mxu0
    %v296 = vadd.f32 %v140, %v295
    %v297 = vpop.f32.mrf.mxu0
    %v298 = vadd.f32 %v140, %v297
    %299 = vmatmul.bf16.gmra.mxu0 %v207
    %v300 = vpop.f32.mrf.mxu0
    %v301 = vadd.f32 %v140, %v300
    %v302 = vpop.f32.mrf.mxu0
    %v303 = vadd.f32 %v140, %v302
    %304 = vmatmul.bf16.gmra.mxu0 %v208
    %v305 = vpop.f32.mrf.mxu0
    %v306 = vadd.f32 %v140, %v305
    %v307 = vpop.f32.mrf.mxu0
    %v308 = vadd.f32 %v140, %v307
    %309 = vmatmul.bf16.gmra.mxu0 %v209
    %v310 = vpop.f32.mrf.mxu0
    %v311 = vadd.f32 %v140, %v310
    %v312 = vpop.f32.mrf.mxu0
    %v313 = vadd.f32 %v140, %v312
    %314 = vmatmul.bf16.gmra.mxu0 %v210
    %v315 = vpop.f32.mrf.mxu0
    %v316 = vadd.f32 %v140, %v315
    %v317 = vpop.f32.mrf.mxu0
    %v318 = vadd.f32 %v140, %v317
    %319 = vmatmul.bf16.gmra.mxu0 %v211
    %v320 = vpop.f32.mrf.mxu0
    %v321 = vadd.f32 %v140, %v320
    %v322 = vpop.f32.mrf.mxu0
    %v323 = vadd.f32 %v140, %v322
    %324 = vmatmul.bf16.gmra.mxu0 %v212
    %v325 = vpop.f32.mrf.mxu0
    %v326 = vadd.f32 %v140, %v325
    %v327 = vpop.f32.mrf.mxu0
    %v328 = vadd.f32 %v140, %v327
    %329 = vmatmul.bf16.gmra.mxu0 %v213
    %v330 = vpop.f32.mrf.mxu0
    %v331 = vadd.f32 %v140, %v330
    %v332 = vpop.f32.mrf.mxu0
    %v333 = vadd.f32 %v140, %v332
    %334 = vmatmul.bf16.gmra.mxu0 %v214
    %v335 = vpop.f32.mrf.mxu0
    %v336 = vadd.f32 %v140, %v335
    %v337 = vpop.f32.mrf.mxu0
    %v338 = vadd.f32 %v140, %v337
    %339 = vmatmul.bf16.gmra.mxu0 %v215
    %v340 = vpop.f32.mrf.mxu0
    %v341 = vadd.f32 %v140, %v340
    %v342 = vpop.f32.mrf.mxu0
    %v343 = vadd.f32 %v140, %v342
    %344 = vmatmul.bf16.gmra.mxu0 %v216
    %v345 = vpop.f32.mrf.mxu0
    %v346 = vadd.f32 %v140, %v345
    %v347 = vpop.f32.mrf.mxu0
    %v348 = vadd.f32 %v140, %v347
    %349 = vmatmul.bf16.gmra.mxu0 %v217
    %v350 = vpop.f32.mrf.mxu0
    %v351 = vadd.f32 %v140, %v350
    %v352 = vpop.f32.mrf.mxu0
    %v353 = vadd.f32 %v140, %v352
    %354 = vmatmul.bf16.gmra.mxu0 %v218
    %v355 = vpop.f32.mrf.mxu0
    %v356 = vadd.f32 %v140, %v355
    %v357 = vpop.f32.mrf.mxu0
    %v358 = vadd.f32 %v140, %v357
    %359 = vmatmul.bf16.gmra.mxu0 %v219
    %v360 = vpop.f32.mrf.mxu0
    %v361 = vadd.f32 %v140, %v360
    %v362 = vpop.f32.mrf.mxu0
    %v363 = vadd.f32 %v140, %v362
    %364 = vmatmul.bf16.gmra.mxu0 %v220
    %v365 = vpop.f32.mrf.mxu0
    %v366 = vadd.f32 %v140, %v365
    %v367 = vpop.f32.mrf.mxu0
    %v368 = vadd.f32 %v140, %v367
    %369 = vmatmul.bf16.gmra.mxu0 %v221
    %v370 = vpop.f32.mrf.mxu0
    %v371 = vadd.f32 %v140, %v370
    %v372 = vpop.f32.mrf.mxu0
    %v373 = vadd.f32 %v140, %v372
    %374 = vdwg.mxu0
    %v375 = vxor.u32 %v296, 2147483648
    %v376 = vxor.u32 %v298, 2147483648
    %v377 = vxor.u32 %v301, 2147483648
    %v378 = vxor.u32 %v303, 2147483648
    %v379 = vxor.u32 %v306, 2147483648
    %v380 = vxor.u32 %v308, 2147483648
    %v381 = vxor.u32 %v311, 2147483648
    %v382 = vxor.u32 %v313, 2147483648
    %v383 = vxor.u32 %v316, 2147483648
    %v384 = vxor.u32 %v318, 2147483648
    %v385 = vxor.u32 %v321, 2147483648
    %v386 = vxor.u32 %v323, 2147483648
    %v387 = vxor.u32 %v326, 2147483648
    %v388 = vxor.u32 %v328, 2147483648
    %v389 = vxor.u32 %v331, 2147483648
    %v390 = vxor.u32 %v333, 2147483648
    %v391 = vxor.u32 %v336, 2147483648
    %v392 = vxor.u32 %v338, 2147483648
    %v393 = vxor.u32 %v341, 2147483648
    %v394 = vxor.u32 %v343, 2147483648
    %v395 = vxor.u32 %v346, 2147483648
    %v396 = vxor.u32 %v348, 2147483648
    %v397 = vxor.u32 %v351, 2147483648
    %v398 = vxor.u32 %v353, 2147483648
    %v399 = vxor.u32 %v356, 2147483648
    %v400 = vxor.u32 %v358, 2147483648
    %v401 = vxor.u32 %v361, 2147483648
    %v402 = vxor.u32 %v363, 2147483648
    %v403 = vxor.u32 %v366, 2147483648
    %v404 = vxor.u32 %v368, 2147483648
    %v405 = vxor.u32 %v371, 2147483648
    %v406 = vxor.u32 %v373, 2147483648
    %v407 = vmul.f32 %v375, 1.442695
    %v408 = vpow.pop %v407
    %v409 = vmul.f32 %v376, 1.442695
    %v410 = vpow.pop %v409
    %v411 = vmul.f32 %v377, 1.442695
    %v412 = vpow.pop %v411
    %v413 = vmul.f32 %v378, 1.442695
    %v414 = vpow.pop %v413
    %v415 = vmul.f32 %v379, 1.442695
    %v416 = vpow.pop %v415
    %v417 = vmul.f32 %v380, 1.442695
    %v418 = vpow.pop %v417
    %v419 = vmul.f32 %v381, 1.442695
    %v420 = vpow.pop %v419
    %v421 = vmul.f32 %v382, 1.442695
    %v422 = vpow.pop %v421
    %v423 = vmul.f32 %v383, 1.442695
    %v424 = vpow.pop %v423
    %v425 = vmul.f32 %v384, 1.442695
    %v426 = vpow.pop %v425
    %v427 = vmul.f32 %v385, 1.442695
    %v428 = vpow.pop %v427
    %v429 = vmul.f32 %v386, 1.442695
    %v430 = vpow.pop %v429
    %v431 = vmul.f32 %v387, 1.442695
    %v432 = vpow.pop %v431
    %v433 = vmul.f32 %v388, 1.442695
    %v434 = vpow.pop %v433
    %v435 = vmul.f32 %v389, 1.442695
    %v436 = vpow.pop %v435
    %v437 = vmul.f32 %v390, 1.442695
    %v438 = vpow.pop %v437
    %v439 = vmul.f32 %v391, 1.442695
    %v440 = vpow.pop %v439
    %v441 = vmul.f32 %v392, 1.442695
    %v442 = vpow.pop %v441
    %v443 = vmul.f32 %v393, 1.442695
    %v444 = vpow.pop %v443
    %v445 = vmul.f32 %v394, 1.442695
    %v446 = vpow.pop %v445
    %v447 = vmul.f32 %v395, 1.442695
    %v448 = vpow.pop %v447
    %v449 = vmul.f32 %v396, 1.442695
    %v450 = vpow.pop %v449
    %v451 = vmul.f32 %v397, 1.442695
    %v452 = vpow.pop %v451
    %v453 = vmul.f32 %v398, 1.442695
    %v454 = vpow.pop %v453
    %v455 = vmul.f32 %v399, 1.442695
    %v456 = vpow.pop %v455
    %v457 = vmul.f32 %v400, 1.442695
    %v458 = vpow.pop %v457
    %v459 = vmul.f32 %v401, 1.442695
    %v460 = vpow.pop %v459
    %v461 = vmul.f32 %v402, 1.442695
    %v462 = vpow.pop %v461
    %v463 = vmul.f32 %v403, 1.442695
    %v464 = vpow.pop %v463
    %v465 = vmul.f32 %v404, 1.442695
    %v466 = vpow.pop %v465
    %v467 = vmul.f32 %v405, 1.442695
    %v468 = vpow.pop %v467
    %v469 = vmul.f32 %v406, 1.442695
    %v470 = vpow.pop %v469
    %v471 = vadd.f32 %v408, 1.0
    %v472 = vadd.f32 %v410, 1.0
    %v473 = vadd.f32 %v412, 1.0
    %v474 = vadd.f32 %v414, 1.0
    %v475 = vadd.f32 %v416, 1.0
    %v476 = vadd.f32 %v418, 1.0
    %v477 = vadd.f32 %v420, 1.0
    %v478 = vadd.f32 %v422, 1.0
    %v479 = vadd.f32 %v424, 1.0
    %v480 = vadd.f32 %v426, 1.0
    %v481 = vadd.f32 %v428, 1.0
    %v482 = vadd.f32 %v430, 1.0
    %v483 = vadd.f32 %v432, 1.0
    %v484 = vadd.f32 %v434, 1.0
    %v485 = vadd.f32 %v436, 1.0
    %v486 = vadd.f32 %v438, 1.0
    %v487 = vadd.f32 %v440, 1.0
    %v488 = vadd.f32 %v442, 1.0
    %v489 = vadd.f32 %v444, 1.0
    %v490 = vadd.f32 %v446, 1.0
    %v491 = vadd.f32 %v448, 1.0
    %v492 = vadd.f32 %v450, 1.0
    %v493 = vadd.f32 %v452, 1.0
    %v494 = vadd.f32 %v454, 1.0
    %v495 = vadd.f32 %v456, 1.0
    %v496 = vadd.f32 %v458, 1.0
    %v497 = vadd.f32 %v460, 1.0
    %v498 = vadd.f32 %v462, 1.0
    %v499 = vadd.f32 %v464, 1.0
    %v500 = vadd.f32 %v466, 1.0
    %v501 = vadd.f32 %v468, 1.0
    %v502 = vadd.f32 %v470, 1.0
    %v503 = vrcp.pop %v471
    %v504 = vmul.f32 %v471, %v503
    %v505 = vsub.f32 1.0, %v504
    %v506 = vmul.f32 %v503, %v505
    %v507 = vadd.f32 %v503, %v506
    %vm508 = vweird.f32 %v471
    %vm509 = vweird.f32 %v503
    %vm510 = vmor %vm508, %vm509
    %v511 = vsel %vm510, %v503, %v507
    %v512 = vand.u32 2147483647, %v471
    %vm513 = vcmp.eq.f32.partialorder %v512, 8.507059e+37
    %v514 = vand.u32 %v471, 2147483648
    %v515 = vor.u32 1.1754944e-38, %v514
    %v516 = vsel %vm513, %v515, %v511
    %v517 = vmul.f32 1.0, %v516
    %v518 = vrcp.pop %v472
    %v519 = vmul.f32 %v472, %v518
    %v520 = vsub.f32 1.0, %v519
    %v521 = vmul.f32 %v518, %v520
    %v522 = vadd.f32 %v518, %v521
    %vm523 = vweird.f32 %v472
    %vm524 = vweird.f32 %v518
    %vm525 = vmor %vm523, %vm524
    %v526 = vsel %vm525, %v518, %v522
    %v527 = vand.u32 2147483647, %v472
    %vm528 = vcmp.eq.f32.partialorder %v527, 8.507059e+37
    %v529 = vand.u32 %v472, 2147483648
    %v530 = vor.u32 1.1754944e-38, %v529
    %v531 = vsel %vm528, %v530, %v526
    %v532 = vmul.f32 1.0, %v531
    %v533 = vrcp.pop %v473
    %v534 = vmul.f32 %v473, %v533
    %v535 = vsub.f32 1.0, %v534
    %v536 = vmul.f32 %v533, %v535
    %v537 = vadd.f32 %v533, %v536
    %vm538 = vweird.f32 %v473
    %vm539 = vweird.f32 %v533
    %vm540 = vmor %vm538, %vm539
    %v541 = vsel %vm540, %v533, %v537
    %v542 = vand.u32 2147483647, %v473
    %vm543 = vcmp.eq.f32.partialorder %v542, 8.507059e+37
    %v544 = vand.u32 %v473, 2147483648
    %v545 = vor.u32 1.1754944e-38, %v544
    %v546 = vsel %vm543, %v545, %v541
    %v547 = vmul.f32 1.0, %v546
    %v548 = vrcp.pop %v474
    %v549 = vmul.f32 %v474, %v548
    %v550 = vsub.f32 1.0, %v549
    %v551 = vmul.f32 %v548, %v550
    %v552 = vadd.f32 %v548, %v551
    %vm553 = vweird.f32 %v474
    %vm554 = vweird.f32 %v548
    %vm555 = vmor %vm553, %vm554
    %v556 = vsel %vm555, %v548, %v552
    %v557 = vand.u32 2147483647, %v474
    %vm558 = vcmp.eq.f32.partialorder %v557, 8.507059e+37
    %v559 = vand.u32 %v474, 2147483648
    %v560 = vor.u32 1.1754944e-38, %v559
    %v561 = vsel %vm558, %v560, %v556
    %v562 = vmul.f32 1.0, %v561
    %v563 = vrcp.pop %v475
    %v564 = vmul.f32 %v475, %v563
    %v565 = vsub.f32 1.0, %v564
    %v566 = vmul.f32 %v563, %v565
    %v567 = vadd.f32 %v563, %v566
    %vm568 = vweird.f32 %v475
    %vm569 = vweird.f32 %v563
    %vm570 = vmor %vm568, %vm569
    %v571 = vsel %vm570, %v563, %v567
    %v572 = vand.u32 2147483647, %v475
    %vm573 = vcmp.eq.f32.partialorder %v572, 8.507059e+37
    %v574 = vand.u32 %v475, 2147483648
    %v575 = vor.u32 1.1754944e-38, %v574
    %v576 = vsel %vm573, %v575, %v571
    %v577 = vmul.f32 1.0, %v576
    %v578 = vrcp.pop %v476
    %v579 = vmul.f32 %v476, %v578
    %v580 = vsub.f32 1.0, %v579
    %v581 = vmul.f32 %v578, %v580
    %v582 = vadd.f32 %v578, %v581
    %vm583 = vweird.f32 %v476
    %vm584 = vweird.f32 %v578
    %vm585 = vmor %vm583, %vm584
    %v586 = vsel %vm585, %v578, %v582
    %v587 = vand.u32 2147483647, %v476
    %vm588 = vcmp.eq.f32.partialorder %v587, 8.507059e+37
    %v589 = vand.u32 %v476, 2147483648
    %v590 = vor.u32 1.1754944e-38, %v589
    %v591 = vsel %vm588, %v590, %v586
    %v592 = vmul.f32 1.0, %v591
    %v593 = vrcp.pop %v477
    %v594 = vmul.f32 %v477, %v593
    %v595 = vsub.f32 1.0, %v594
    %v596 = vmul.f32 %v593, %v595
    %v597 = vadd.f32 %v593, %v596
    %vm598 = vweird.f32 %v477
    %vm599 = vweird.f32 %v593
    %vm600 = vmor %vm598, %vm599
    %v601 = vsel %vm600, %v593, %v597
    %v602 = vand.u32 2147483647, %v477
    %vm603 = vcmp.eq.f32.partialorder %v602, 8.507059e+37
    %v604 = vand.u32 %v477, 2147483648
    %v605 = vor.u32 1.1754944e-38, %v604
    %v606 = vsel %vm603, %v605, %v601
    %v607 = vmul.f32 1.0, %v606
    %v608 = vrcp.pop %v478
    %v609 = vmul.f32 %v478, %v608
    %v610 = vsub.f32 1.0, %v609
    %v611 = vmul.f32 %v608, %v610
    %v612 = vadd.f32 %v608, %v611
    %vm613 = vweird.f32 %v478
    %vm614 = vweird.f32 %v608
    %vm615 = vmor %vm613, %vm614
    %v616 = vsel %vm615, %v608, %v612
    %v617 = vand.u32 2147483647, %v478
    %vm618 = vcmp.eq.f32.partialorder %v617, 8.507059e+37
    %v619 = vand.u32 %v478, 2147483648
    %v620 = vor.u32 1.1754944e-38, %v619
    %v621 = vsel %vm618, %v620, %v616
    %v622 = vmul.f32 1.0, %v621
    %v623 = vrcp.pop %v479
    %v624 = vmul.f32 %v479, %v623
    %v625 = vsub.f32 1.0, %v624
    %v626 = vmul.f32 %v623, %v625
    %v627 = vadd.f32 %v623, %v626
    %vm628 = vweird.f32 %v479
    %vm629 = vweird.f32 %v623
    %vm630 = vmor %vm628, %vm629
    %v631 = vsel %vm630, %v623, %v627
    %v632 = vand.u32 2147483647, %v479
    %vm633 = vcmp.eq.f32.partialorder %v632, 8.507059e+37
    %v634 = vand.u32 %v479, 2147483648
    %v635 = vor.u32 1.1754944e-38, %v634
    %v636 = vsel %vm633, %v635, %v631
    %v637 = vmul.f32 1.0, %v636
    %v638 = vrcp.pop %v480
    %v639 = vmul.f32 %v480, %v638
    %v640 = vsub.f32 1.0, %v639
    %v641 = vmul.f32 %v638, %v640
    %v642 = vadd.f32 %v638, %v641
    %vm643 = vweird.f32 %v480
    %vm644 = vweird.f32 %v638
    %vm645 = vmor %vm643, %vm644
    %v646 = vsel %vm645, %v638, %v642
    %v647 = vand.u32 2147483647, %v480
    %vm648 = vcmp.eq.f32.partialorder %v647, 8.507059e+37
    %v649 = vand.u32 %v480, 2147483648
    %v650 = vor.u32 1.1754944e-38, %v649
    %v651 = vsel %vm648, %v650, %v646
    %v652 = vmul.f32 1.0, %v651
    %v653 = vrcp.pop %v481
    %v654 = vmul.f32 %v481, %v653
    %v655 = vsub.f32 1.0, %v654
    %v656 = vmul.f32 %v653, %v655
    %v657 = vadd.f32 %v653, %v656
    %vm658 = vweird.f32 %v481
    %vm659 = vweird.f32 %v653
    %vm660 = vmor %vm658, %vm659
    %v661 = vsel %vm660, %v653, %v657
    %v662 = vand.u32 2147483647, %v481
    %vm663 = vcmp.eq.f32.partialorder %v662, 8.507059e+37
    %v664 = vand.u32 %v481, 2147483648
    %v665 = vor.u32 1.1754944e-38, %v664
    %v666 = vsel %vm663, %v665, %v661
    %v667 = vmul.f32 1.0, %v666
    %v668 = vrcp.pop %v482
    %v669 = vmul.f32 %v482, %v668
    %v670 = vsub.f32 1.0, %v669
    %v671 = vmul.f32 %v668, %v670
    %v672 = vadd.f32 %v668, %v671
    %vm673 = vweird.f32 %v482
    %vm674 = vweird.f32 %v668
    %vm675 = vmor %vm673, %vm674
    %v676 = vsel %vm675, %v668, %v672
    %v677 = vand.u32 2147483647, %v482
    %vm678 = vcmp.eq.f32.partialorder %v677, 8.507059e+37
    %v679 = vand.u32 %v482, 2147483648
    %v680 = vor.u32 1.1754944e-38, %v679
    %v681 = vsel %vm678, %v680, %v676
    %v682 = vmul.f32 1.0, %v681
    %v683 = vrcp.pop %v483
    %v684 = vmul.f32 %v483, %v683
    %v685 = vsub.f32 1.0, %v684
    %v686 = vmul.f32 %v683, %v685
    %v687 = vadd.f32 %v683, %v686
    %vm688 = vweird.f32 %v483
    %vm689 = vweird.f32 %v683
    %vm690 = vmor %vm688, %vm689
    %v691 = vsel %vm690, %v683, %v687
    %v692 = vand.u32 2147483647, %v483
    %vm693 = vcmp.eq.f32.partialorder %v692, 8.507059e+37
    %v694 = vand.u32 %v483, 2147483648
    %v695 = vor.u32 1.1754944e-38, %v694
    %v696 = vsel %vm693, %v695, %v691
    %v697 = vmul.f32 1.0, %v696
    %v698 = vrcp.pop %v484
    %v699 = vmul.f32 %v484, %v698
    %v700 = vsub.f32 1.0, %v699
    %v701 = vmul.f32 %v698, %v700
    %v702 = vadd.f32 %v698, %v701
    %vm703 = vweird.f32 %v484
    %vm704 = vweird.f32 %v698
    %vm705 = vmor %vm703, %vm704
    %v706 = vsel %vm705, %v698, %v702
    %v707 = vand.u32 2147483647, %v484
    %vm708 = vcmp.eq.f32.partialorder %v707, 8.507059e+37
    %v709 = vand.u32 %v484, 2147483648
    %v710 = vor.u32 1.1754944e-38, %v709
    %v711 = vsel %vm708, %v710, %v706
    %v712 = vmul.f32 1.0, %v711
    %v713 = vrcp.pop %v485
    %v714 = vmul.f32 %v485, %v713
    %v715 = vsub.f32 1.0, %v714
    %v716 = vmul.f32 %v713, %v715
    %v717 = vadd.f32 %v713, %v716
    %vm718 = vweird.f32 %v485
    %vm719 = vweird.f32 %v713
    %vm720 = vmor %vm718, %vm719
    %v721 = vsel %vm720, %v713, %v717
    %v722 = vand.u32 2147483647, %v485
    %vm723 = vcmp.eq.f32.partialorder %v722, 8.507059e+37
    %v724 = vand.u32 %v485, 2147483648
    %v725 = vor.u32 1.1754944e-38, %v724
    %v726 = vsel %vm723, %v725, %v721
    %v727 = vmul.f32 1.0, %v726
    %v728 = vrcp.pop %v486
    %v729 = vmul.f32 %v486, %v728
    %v730 = vsub.f32 1.0, %v729
    %v731 = vmul.f32 %v728, %v730
    %v732 = vadd.f32 %v728, %v731
    %vm733 = vweird.f32 %v486
    %vm734 = vweird.f32 %v728
    %vm735 = vmor %vm733, %vm734
    %v736 = vsel %vm735, %v728, %v732
    %v737 = vand.u32 2147483647, %v486
    %vm738 = vcmp.eq.f32.partialorder %v737, 8.507059e+37
    %v739 = vand.u32 %v486, 2147483648
    %v740 = vor.u32 1.1754944e-38, %v739
    %v741 = vsel %vm738, %v740, %v736
    %v742 = vmul.f32 1.0, %v741
    %v743 = vrcp.pop %v487
    %v744 = vmul.f32 %v487, %v743
    %v745 = vsub.f32 1.0, %v744
    %v746 = vmul.f32 %v743, %v745
    %v747 = vadd.f32 %v743, %v746
    %vm748 = vweird.f32 %v487
    %vm749 = vweird.f32 %v743
    %vm750 = vmor %vm748, %vm749
    %v751 = vsel %vm750, %v743, %v747
    %v752 = vand.u32 2147483647, %v487
    %vm753 = vcmp.eq.f32.partialorder %v752, 8.507059e+37
    %v754 = vand.u32 %v487, 2147483648
    %v755 = vor.u32 1.1754944e-38, %v754
    %v756 = vsel %vm753, %v755, %v751
    %v757 = vmul.f32 1.0, %v756
    %v758 = vrcp.pop %v488
    %v759 = vmul.f32 %v488, %v758
    %v760 = vsub.f32 1.0, %v759
    %v761 = vmul.f32 %v758, %v760
    %v762 = vadd.f32 %v758, %v761
    %vm763 = vweird.f32 %v488
    %vm764 = vweird.f32 %v758
    %vm765 = vmor %vm763, %vm764
    %v766 = vsel %vm765, %v758, %v762
    %v767 = vand.u32 2147483647, %v488
    %vm768 = vcmp.eq.f32.partialorder %v767, 8.507059e+37
    %v769 = vand.u32 %v488, 2147483648
    %v770 = vor.u32 1.1754944e-38, %v769
    %v771 = vsel %vm768, %v770, %v766
    %v772 = vmul.f32 1.0, %v771
    %v773 = vrcp.pop %v489
    %v774 = vmul.f32 %v489, %v773
    %v775 = vsub.f32 1.0, %v774
    %v776 = vmul.f32 %v773, %v775
    %v777 = vadd.f32 %v773, %v776
    %vm778 = vweird.f32 %v489
    %vm779 = vweird.f32 %v773
    %vm780 = vmor %vm778, %vm779
    %v781 = vsel %vm780, %v773, %v777
    %v782 = vand.u32 2147483647, %v489
    %vm783 = vcmp.eq.f32.partialorder %v782, 8.507059e+37
    %v784 = vand.u32 %v489, 2147483648
    %v785 = vor.u32 1.1754944e-38, %v784
    %v786 = vsel %vm783, %v785, %v781
    %v787 = vmul.f32 1.0, %v786
    %v788 = vrcp.pop %v490
    %v789 = vmul.f32 %v490, %v788
    %v790 = vsub.f32 1.0, %v789
    %v791 = vmul.f32 %v788, %v790
    %v792 = vadd.f32 %v788, %v791
    %vm793 = vweird.f32 %v490
    %vm794 = vweird.f32 %v788
    %vm795 = vmor %vm793, %vm794
    %v796 = vsel %vm795, %v788, %v792
    %v797 = vand.u32 2147483647, %v490
    %vm798 = vcmp.eq.f32.partialorder %v797, 8.507059e+37
    %v799 = vand.u32 %v490, 2147483648
    %v800 = vor.u32 1.1754944e-38, %v799
    %v801 = vsel %vm798, %v800, %v796
    %v802 = vmul.f32 1.0, %v801
    %v803 = vrcp.pop %v491
    %v804 = vmul.f32 %v491, %v803
    %v805 = vsub.f32 1.0, %v804
    %v806 = vmul.f32 %v803, %v805
    %v807 = vadd.f32 %v803, %v806
    %vm808 = vweird.f32 %v491
    %vm809 = vweird.f32 %v803
    %vm810 = vmor %vm808, %vm809
    %v811 = vsel %vm810, %v803, %v807
    %v812 = vand.u32 2147483647, %v491
    %vm813 = vcmp.eq.f32.partialorder %v812, 8.507059e+37
    %v814 = vand.u32 %v491, 2147483648
    %v815 = vor.u32 1.1754944e-38, %v814
    %v816 = vsel %vm813, %v815, %v811
    %v817 = vmul.f32 1.0, %v816
    %v818 = vrcp.pop %v492
    %v819 = vmul.f32 %v492, %v818
    %v820 = vsub.f32 1.0, %v819
    %v821 = vmul.f32 %v818, %v820
    %v822 = vadd.f32 %v818, %v821
    %vm823 = vweird.f32 %v492
    %vm824 = vweird.f32 %v818
    %vm825 = vmor %vm823, %vm824
    %v826 = vsel %vm825, %v818, %v822
    %v827 = vand.u32 2147483647, %v492
    %vm828 = vcmp.eq.f32.partialorder %v827, 8.507059e+37
    %v829 = vand.u32 %v492, 2147483648
    %v830 = vor.u32 1.1754944e-38, %v829
    %v831 = vsel %vm828, %v830, %v826
    %v832 = vmul.f32 1.0, %v831
    %v833 = vrcp.pop %v493
    %v834 = vmul.f32 %v493, %v833
    %v835 = vsub.f32 1.0, %v834
    %v836 = vmul.f32 %v833, %v835
    %v837 = vadd.f32 %v833, %v836
    %vm838 = vweird.f32 %v493
    %vm839 = vweird.f32 %v833
    %vm840 = vmor %vm838, %vm839
    %v841 = vsel %vm840, %v833, %v837
    %v842 = vand.u32 2147483647, %v493
    %vm843 = vcmp.eq.f32.partialorder %v842, 8.507059e+37
    %v844 = vand.u32 %v493, 2147483648
    %v845 = vor.u32 1.1754944e-38, %v844
    %v846 = vsel %vm843, %v845, %v841
    %v847 = vmul.f32 1.0, %v846
    %v848 = vrcp.pop %v494
    %v849 = vmul.f32 %v494, %v848
    %v850 = vsub.f32 1.0, %v849
    %v851 = vmul.f32 %v848, %v850
    %v852 = vadd.f32 %v848, %v851
    %vm853 = vweird.f32 %v494
    %vm854 = vweird.f32 %v848
    %vm855 = vmor %vm853, %vm854
    %v856 = vsel %vm855, %v848, %v852
    %v857 = vand.u32 2147483647, %v494
    %vm858 = vcmp.eq.f32.partialorder %v857, 8.507059e+37
    %v859 = vand.u32 %v494, 2147483648
    %v860 = vor.u32 1.1754944e-38, %v859
    %v861 = vsel %vm858, %v860, %v856
    %v862 = vmul.f32 1.0, %v861
    %v863 = vrcp.pop %v495
    %v864 = vmul.f32 %v495, %v863
    %v865 = vsub.f32 1.0, %v864
    %v866 = vmul.f32 %v863, %v865
    %v867 = vadd.f32 %v863, %v866
    %vm868 = vweird.f32 %v495
    %vm869 = vweird.f32 %v863
    %vm870 = vmor %vm868, %vm869
    %v871 = vsel %vm870, %v863, %v867
    %v872 = vand.u32 2147483647, %v495
    %vm873 = vcmp.eq.f32.partialorder %v872, 8.507059e+37
    %v874 = vand.u32 %v495, 2147483648
    %v875 = vor.u32 1.1754944e-38, %v874
    %v876 = vsel %vm873, %v875, %v871
    %v877 = vmul.f32 1.0, %v876
    %v878 = vrcp.pop %v496
    %v879 = vmul.f32 %v496, %v878
    %v880 = vsub.f32 1.0, %v879
    %v881 = vmul.f32 %v878, %v880
    %v882 = vadd.f32 %v878, %v881
    %vm883 = vweird.f32 %v496
    %vm884 = vweird.f32 %v878
    %vm885 = vmor %vm883, %vm884
    %v886 = vsel %vm885, %v878, %v882
    %v887 = vand.u32 2147483647, %v496
    %vm888 = vcmp.eq.f32.partialorder %v887, 8.507059e+37
    %v889 = vand.u32 %v496, 2147483648
    %v890 = vor.u32 1.1754944e-38, %v889
    %v891 = vsel %vm888, %v890, %v886
    %v892 = vmul.f32 1.0, %v891
    %v893 = vrcp.pop %v497
    %v894 = vmul.f32 %v497, %v893
    %v895 = vsub.f32 1.0, %v894
    %v896 = vmul.f32 %v893, %v895
    %v897 = vadd.f32 %v893, %v896
    %vm898 = vweird.f32 %v497
    %vm899 = vweird.f32 %v893
    %vm900 = vmor %vm898, %vm899
    %v901 = vsel %vm900, %v893, %v897
    %v902 = vand.u32 2147483647, %v497
    %vm903 = vcmp.eq.f32.partialorder %v902, 8.507059e+37
    %v904 = vand.u32 %v497, 2147483648
    %v905 = vor.u32 1.1754944e-38, %v904
    %v906 = vsel %vm903, %v905, %v901
    %v907 = vmul.f32 1.0, %v906
    %v908 = vrcp.pop %v498
    %v909 = vmul.f32 %v498, %v908
    %v910 = vsub.f32 1.0, %v909
    %v911 = vmul.f32 %v908, %v910
    %v912 = vadd.f32 %v908, %v911
    %vm913 = vweird.f32 %v498
    %vm914 = vweird.f32 %v908
    %vm915 = vmor %vm913, %vm914
    %v916 = vsel %vm915, %v908, %v912
    %v917 = vand.u32 2147483647, %v498
    %vm918 = vcmp.eq.f32.partialorder %v917, 8.507059e+37
    %v919 = vand.u32 %v498, 2147483648
    %v920 = vor.u32 1.1754944e-38, %v919
    %v921 = vsel %vm918, %v920, %v916
    %v922 = vmul.f32 1.0, %v921
    %v923 = vrcp.pop %v499
    %v924 = vmul.f32 %v499, %v923
    %v925 = vsub.f32 1.0, %v924
    %v926 = vmul.f32 %v923, %v925
    %v927 = vadd.f32 %v923, %v926
    %vm928 = vweird.f32 %v499
    %vm929 = vweird.f32 %v923
    %vm930 = vmor %vm928, %vm929
    %v931 = vsel %vm930, %v923, %v927
    %v932 = vand.u32 2147483647, %v499
    %vm933 = vcmp.eq.f32.partialorder %v932, 8.507059e+37
    %v934 = vand.u32 %v499, 2147483648
    %v935 = vor.u32 1.1754944e-38, %v934
    %v936 = vsel %vm933, %v935, %v931
    %v937 = vmul.f32 1.0, %v936
    %v938 = vrcp.pop %v500
    %v939 = vmul.f32 %v500, %v938
    %v940 = vsub.f32 1.0, %v939
    %v941 = vmul.f32 %v938, %v940
    %v942 = vadd.f32 %v938, %v941
    %vm943 = vweird.f32 %v500
    %vm944 = vweird.f32 %v938
    %vm945 = vmor %vm943, %vm944
    %v946 = vsel %vm945, %v938, %v942
    %v947 = vand.u32 2147483647, %v500
    %vm948 = vcmp.eq.f32.partialorder %v947, 8.507059e+37
    %v949 = vand.u32 %v500, 2147483648
    %v950 = vor.u32 1.1754944e-38, %v949
    %v951 = vsel %vm948, %v950, %v946
    %v952 = vmul.f32 1.0, %v951
    %v953 = vrcp.pop %v501
    %v954 = vmul.f32 %v501, %v953
    %v955 = vsub.f32 1.0, %v954
    %v956 = vmul.f32 %v953, %v955
    %v957 = vadd.f32 %v953, %v956
    %vm958 = vweird.f32 %v501
    %vm959 = vweird.f32 %v953
    %vm960 = vmor %vm958, %vm959
    %v961 = vsel %vm960, %v953, %v957
    %v962 = vand.u32 2147483647, %v501
    %vm963 = vcmp.eq.f32.partialorder %v962, 8.507059e+37
    %v964 = vand.u32 %v501, 2147483648
    %v965 = vor.u32 1.1754944e-38, %v964
    %v966 = vsel %vm963, %v965, %v961
    %v967 = vmul.f32 1.0, %v966
    %v968 = vrcp.pop %v502
    %v969 = vmul.f32 %v502, %v968
    %v970 = vsub.f32 1.0, %v969
    %v971 = vmul.f32 %v968, %v970
    %v972 = vadd.f32 %v968, %v971
    %vm973 = vweird.f32 %v502
    %vm974 = vweird.f32 %v968
    %vm975 = vmor %vm973, %vm974
    %v976 = vsel %vm975, %v968, %v972
    %v977 = vand.u32 2147483647, %v502
    %vm978 = vcmp.eq.f32.partialorder %v977, 8.507059e+37
    %v979 = vand.u32 %v502, 2147483648
    %v980 = vor.u32 1.1754944e-38, %v979
    %v981 = vsel %vm978, %v980, %v976
    %v982 = vmul.f32 1.0, %v981
    %v983 = vmul.f32 %v296, %v517
    %v984 = vmul.f32 %v298, %v532
    %v985 = vmul.f32 %v301, %v547
    %v986 = vmul.f32 %v303, %v562
    %v987 = vmul.f32 %v306, %v577
    %v988 = vmul.f32 %v308, %v592
    %v989 = vmul.f32 %v311, %v607
    %v990 = vmul.f32 %v313, %v622
    %v991 = vmul.f32 %v316, %v637
    %v992 = vmul.f32 %v318, %v652
    %v993 = vmul.f32 %v321, %v667
    %v994 = vmul.f32 %v323, %v682
    %v995 = vmul.f32 %v326, %v697
    %v996 = vmul.f32 %v328, %v712
    %v997 = vmul.f32 %v331, %v727
    %v998 = vmul.f32 %v333, %v742
    %v999 = vmul.f32 %v336, %v757
    %v1000 = vmul.f32 %v338, %v772
    %v1001 = vmul.f32 %v341, %v787
    %v1002 = vmul.f32 %v343, %v802
    %v1003 = vmul.f32 %v346, %v817
    %v1004 = vmul.f32 %v348, %v832
    %v1005 = vmul.f32 %v351, %v847
    %v1006 = vmul.f32 %v353, %v862
    %v1007 = vmul.f32 %v356, %v877
    %v1008 = vmul.f32 %v358, %v892
    %v1009 = vmul.f32 %v361, %v907
    %v1010 = vmul.f32 %v363, %v922
    %v1011 = vmul.f32 %v366, %v937
    %v1012 = vmul.f32 %v368, %v952
    %v1013 = vmul.f32 %v371, %v967
    %v1014 = vmul.f32 %v373, %v982
    %v1015 = vpack.c.bf16 %v984, %v983
    %v1016 = vpack.c.bf16 %v986, %v985
    %v1017 = vpack.c.bf16 %v988, %v987
    %v1018 = vpack.c.bf16 %v990, %v989
    %v1019 = vpack.c.bf16 %v992, %v991
    %v1020 = vpack.c.bf16 %v994, %v993
    %v1021 = vpack.c.bf16 %v996, %v995
    %v1022 = vpack.c.bf16 %v998, %v997
    %v1023 = vpack.c.bf16 %v1000, %v999
    %v1024 = vpack.c.bf16 %v1002, %v1001
    %v1025 = vpack.c.bf16 %v1004, %v1003
    %v1026 = vpack.c.bf16 %v1006, %v1005
    %v1027 = vpack.c.bf16 %v1008, %v1007
    %v1028 = vpack.c.bf16 %v1010, %v1009
    %v1029 = vpack.c.bf16 %v1012, %v1011
    %v1030 = vpack.c.bf16 %v1014, %v1013
    %v1031 = vld [vmem:[#allocation7] sm:$0xf]
    %v1032 = vld [vmem:[#allocation7 + $0x4] sm:$0xf]
    %v1033 = vld [vmem:[#allocation7 + $0x8] sm:$0xf]
    %v1034 = vld [vmem:[#allocation7 + $0xc] sm:$0xf]
    %v1035 = vld [vmem:[#allocation7 + $0x10] sm:$0xf]
    %v1036 = vld [vmem:[#allocation7 + $0x14] sm:$0xf]
    %v1037 = vld [vmem:[#allocation7 + $0x18] sm:$0xf]
    %v1038 = vld [vmem:[#allocation7 + $0x1c] sm:$0xf]
    %v1039 = vld [vmem:[#allocation7 + $0x20] sm:$0xf]
    %v1040 = vld [vmem:[#allocation7 + $0x24] sm:$0xf]
    %v1041 = vld [vmem:[#allocation7 + $0x28] sm:$0xf]
    %v1042 = vld [vmem:[#allocation7 + $0x2c] sm:$0xf]
    %v1043 = vld [vmem:[#allocation7 + $0x30] sm:$0xf]
    %v1044 = vld [vmem:[#allocation7 + $0x34] sm:$0xf]
    %v1045 = vld [vmem:[#allocation7 + $0x38] sm:$0xf]
    %v1046 = vld [vmem:[#allocation7 + $0x3c] sm:$0xf]
    %v1047 = vld [vmem:[%s4] sm:$0x1]
    %v1049 = vperm.slane %v1047, 0
    %v1067 = vunpack.c.l.b16 %v1031
    %v1068 = vunpack.c.l.b16 %v1032
    %v1069 = vunpack.c.l.b16 %v1033
    %v1070 = vunpack.c.l.b16 %v1034
    %v1071 = vunpack.c.l.b16 %v1035
    %v1072 = vunpack.c.l.b16 %v1036
    %v1073 = vunpack.c.l.b16 %v1037
    %v1074 = vunpack.c.l.b16 %v1038
    %v1075 = vunpack.c.l.b16 %v1039
    %v1076 = vunpack.c.l.b16 %v1040
    %v1077 = vunpack.c.l.b16 %v1041
    %v1078 = vunpack.c.l.b16 %v1042
    %v1079 = vunpack.c.l.b16 %v1043
    %v1080 = vunpack.c.l.b16 %v1044
    %v1081 = vunpack.c.l.b16 %v1045
    %v1082 = vunpack.c.l.b16 %v1046
    %v1083 = vpack.c.b16 %v1068, %v1067
    %v1084 = vpack.c.b16 %v1070, %v1069
    %v1085 = vpack.c.b16 %v1072, %v1071
    %v1086 = vpack.c.b16 %v1074, %v1073
    %v1087 = vpack.c.b16 %v1076, %v1075
    %v1088 = vpack.c.b16 %v1078, %v1077
    %v1089 = vpack.c.b16 %v1080, %v1079
    %v1090 = vpack.c.b16 %v1082, %v1081
    %1099 = vmatpush.bf16.msra.mxu0 %v1090
    %1100 = vmatpush.bf16.msra.mxu0 %v1089
    %1101 = vmatpush.bf16.msra.mxu0 %v1088
    %1102 = vmatpush.bf16.msra.mxu0 %v1087
    %1103 = vmatpush.bf16.msra.mxu0 %v1086
    %1104 = vmatpush.bf16.msra.mxu0 %v1085
    %1105 = vmatpush.bf16.msra.mxu0 %v1084
    %1106 = vmatpush.bf16.msra.mxu0 %v1083
    %1107 = vmatmul.bf16.gmra.mxu0 %v1015
    %v1108 = vpop.f32.mrf.mxu0
    %v1109 = vadd.f32 %v1049, %v1108
    %v1110 = vpop.f32.mrf.mxu0
    %v1111 = vadd.f32 %v1049, %v1110
    %1112 = vmatmul.bf16.gmra.mxu0 %v1016
    %v1113 = vpop.f32.mrf.mxu0
    %v1114 = vadd.f32 %v1049, %v1113
    %v1115 = vpop.f32.mrf.mxu0
    %v1116 = vadd.f32 %v1049, %v1115
    %1117 = vmatmul.bf16.gmra.mxu0 %v1017
    %v1118 = vpop.f32.mrf.mxu0
    %v1119 = vadd.f32 %v1049, %v1118
    %v1120 = vpop.f32.mrf.mxu0
    %v1121 = vadd.f32 %v1049, %v1120
    %1122 = vmatmul.bf16.gmra.mxu0 %v1018
    %v1123 = vpop.f32.mrf.mxu0
    %v1124 = vadd.f32 %v1049, %v1123
    %v1125 = vpop.f32.mrf.mxu0
    %v1126 = vadd.f32 %v1049, %v1125
    %1127 = vmatmul.bf16.gmra.mxu0 %v1019
    %v1128 = vpop.f32.mrf.mxu0
    %v1129 = vadd.f32 %v1049, %v1128
    %v1130 = vpop.f32.mrf.mxu0
    %v1131 = vadd.f32 %v1049, %v1130
    %1132 = vmatmul.bf16.gmra.mxu0 %v1020
    %v1133 = vpop.f32.mrf.mxu0
    %v1134 = vadd.f32 %v1049, %v1133
    %v1135 = vpop.f32.mrf.mxu0
    %v1136 = vadd.f32 %v1049, %v1135
    %1137 = vmatmul.bf16.gmra.mxu0 %v1021
    %v1138 = vpop.f32.mrf.mxu0
    %v1139 = vadd.f32 %v1049, %v1138
    %v1140 = vpop.f32.mrf.mxu0
    %v1141 = vadd.f32 %v1049, %v1140
    %1142 = vmatmul.bf16.gmra.mxu0 %v1022
    %v1143 = vpop.f32.mrf.mxu0
    %v1144 = vadd.f32 %v1049, %v1143
    %v1145 = vpop.f32.mrf.mxu0
    %v1146 = vadd.f32 %v1049, %v1145
    %1147 = vmatmul.bf16.gmra.mxu0 %v1023
    %v1148 = vpop.f32.mrf.mxu0
    %v1149 = vadd.f32 %v1049, %v1148
    %v1150 = vpop.f32.mrf.mxu0
    %v1151 = vadd.f32 %v1049, %v1150
    %1152 = vmatmul.bf16.gmra.mxu0 %v1024
    %v1153 = vpop.f32.mrf.mxu0
    %v1154 = vadd.f32 %v1049, %v1153
    %v1155 = vpop.f32.mrf.mxu0
    %v1156 = vadd.f32 %v1049, %v1155
    %1157 = vmatmul.bf16.gmra.mxu0 %v1025
    %v1158 = vpop.f32.mrf.mxu0
    %v1159 = vadd.f32 %v1049, %v1158
    %v1160 = vpop.f32.mrf.mxu0
    %v1161 = vadd.f32 %v1049, %v1160
    %1162 = vmatmul.bf16.gmra.mxu0 %v1026
    %v1163 = vpop.f32.mrf.mxu0
    %v1164 = vadd.f32 %v1049, %v1163
    %v1165 = vpop.f32.mrf.mxu0
    %v1166 = vadd.f32 %v1049, %v1165
    %1167 = vmatmul.bf16.gmra.mxu0 %v1027
    %v1168 = vpop.f32.mrf.mxu0
    %v1169 = vadd.f32 %v1049, %v1168
    %v1170 = vpop.f32.mrf.mxu0
    %v1171 = vadd.f32 %v1049, %v1170
    %1172 = vmatmul.bf16.gmra.mxu0 %v1028
    %v1173 = vpop.f32.mrf.mxu0
    %v1174 = vadd.f32 %v1049, %v1173
    %v1175 = vpop.f32.mrf.mxu0
    %v1176 = vadd.f32 %v1049, %v1175
    %1177 = vmatmul.bf16.gmra.mxu0 %v1029
    %v1178 = vpop.f32.mrf.mxu0
    %v1179 = vadd.f32 %v1049, %v1178
    %v1180 = vpop.f32.mrf.mxu0
    %v1181 = vadd.f32 %v1049, %v1180
    %1182 = vmatmul.bf16.gmra.mxu0 %v1030
    %v1183 = vpop.f32.mrf.mxu0
    %v1184 = vadd.f32 %v1049, %v1183
    %v1185 = vpop.f32.mrf.mxu0
    %v1186 = vadd.f32 %v1049, %v1185
    %1187 = vdwg.mxu0
    %v1188 = vxor.u32 %v1109, 2147483648
    %v1189 = vxor.u32 %v1111, 2147483648
    %v1190 = vxor.u32 %v1114, 2147483648
    %v1191 = vxor.u32 %v1116, 2147483648
    %v1192 = vxor.u32 %v1119, 2147483648
    %v1193 = vxor.u32 %v1121, 2147483648
    %v1194 = vxor.u32 %v1124, 2147483648
    %v1195 = vxor.u32 %v1126, 2147483648
    %v1196 = vxor.u32 %v1129, 2147483648
    %v1197 = vxor.u32 %v1131, 2147483648
    %v1198 = vxor.u32 %v1134, 2147483648
    %v1199 = vxor.u32 %v1136, 2147483648
    %v1200 = vxor.u32 %v1139, 2147483648
    %v1201 = vxor.u32 %v1141, 2147483648
    %v1202 = vxor.u32 %v1144, 2147483648
    %v1203 = vxor.u32 %v1146, 2147483648
    %v1204 = vxor.u32 %v1149, 2147483648
    %v1205 = vxor.u32 %v1151, 2147483648
    %v1206 = vxor.u32 %v1154, 2147483648
    %v1207 = vxor.u32 %v1156, 2147483648
    %v1208 = vxor.u32 %v1159, 2147483648
    %v1209 = vxor.u32 %v1161, 2147483648
    %v1210 = vxor.u32 %v1164, 2147483648
    %v1211 = vxor.u32 %v1166, 2147483648
    %v1212 = vxor.u32 %v1169, 2147483648
    %v1213 = vxor.u32 %v1171, 2147483648
    %v1214 = vxor.u32 %v1174, 2147483648
    %v1215 = vxor.u32 %v1176, 2147483648
    %v1216 = vxor.u32 %v1179, 2147483648
    %v1217 = vxor.u32 %v1181, 2147483648
    %v1218 = vxor.u32 %v1184, 2147483648
    %v1219 = vxor.u32 %v1186, 2147483648
    %v1220 = vmul.f32 %v1188, 1.442695
    %v1221 = vpow.pop %v1220
    %v1222 = vmul.f32 %v1189, 1.442695
    %v1223 = vpow.pop %v1222
    %v1224 = vmul.f32 %v1190, 1.442695
    %v1225 = vpow.pop %v1224
    %v1226 = vmul.f32 %v1191, 1.442695
    %v1227 = vpow.pop %v1226
    %v1228 = vmul.f32 %v1192, 1.442695
    %v1229 = vpow.pop %v1228
    %v1230 = vmul.f32 %v1193, 1.442695
    %v1231 = vpow.pop %v1230
    %v1232 = vmul.f32 %v1194, 1.442695
    %v1233 = vpow.pop %v1232
    %v1234 = vmul.f32 %v1195, 1.442695
    %v1235 = vpow.pop %v1234
    %v1236 = vmul.f32 %v1196, 1.442695
    %v1237 = vpow.pop %v1236
    %v1238 = vmul.f32 %v1197, 1.442695
    %v1239 = vpow.pop %v1238
    %v1240 = vmul.f32 %v1198, 1.442695
    %v1241 = vpow.pop %v1240
    %v1242 = vmul.f32 %v1199, 1.442695
    %v1243 = vpow.pop %v1242
    %v1244 = vmul.f32 %v1200, 1.442695
    %v1245 = vpow.pop %v1244
    %v1246 = vmul.f32 %v1201, 1.442695
    %v1247 = vpow.pop %v1246
    %v1248 = vmul.f32 %v1202, 1.442695
    %v1249 = vpow.pop %v1248
    %v1250 = vmul.f32 %v1203, 1.442695
    %v1251 = vpow.pop %v1250
    %v1252 = vmul.f32 %v1204, 1.442695
    %v1253 = vpow.pop %v1252
    %v1254 = vmul.f32 %v1205, 1.442695
    %v1255 = vpow.pop %v1254
    %v1256 = vmul.f32 %v1206, 1.442695
    %v1257 = vpow.pop %v1256
    %v1258 = vmul.f32 %v1207, 1.442695
    %v1259 = vpow.pop %v1258
    %v1260 = vmul.f32 %v1208, 1.442695
    %v1261 = vpow.pop %v1260
    %v1262 = vmul.f32 %v1209, 1.442695
    %v1263 = vpow.pop %v1262
    %v1264 = vmul.f32 %v1210, 1.442695
    %v1265 = vpow.pop %v1264
    %v1266 = vmul.f32 %v1211, 1.442695
    %v1267 = vpow.pop %v1266
    %v1268 = vmul.f32 %v1212, 1.442695
    %v1269 = vpow.pop %v1268
    %v1270 = vmul.f32 %v1213, 1.442695
    %v1271 = vpow.pop %v1270
    %v1272 = vmul.f32 %v1214, 1.442695
    %v1273 = vpow.pop %v1272
    %v1274 = vmul.f32 %v1215, 1.442695
    %v1275 = vpow.pop %v1274
    %v1276 = vmul.f32 %v1216, 1.442695
    %v1277 = vpow.pop %v1276
    %v1278 = vmul.f32 %v1217, 1.442695
    %v1279 = vpow.pop %v1278
    %v1280 = vmul.f32 %v1218, 1.442695
    %v1281 = vpow.pop %v1280
    %v1282 = vmul.f32 %v1219, 1.442695
    %v1283 = vpow.pop %v1282
    %v1284 = vadd.f32 %v1221, 1.0
    %v1285 = vadd.f32 %v1223, 1.0
    %v1286 = vadd.f32 %v1225, 1.0
    %v1287 = vadd.f32 %v1227, 1.0
    %v1288 = vadd.f32 %v1229, 1.0
    %v1289 = vadd.f32 %v1231, 1.0
    %v1290 = vadd.f32 %v1233, 1.0
    %v1291 = vadd.f32 %v1235, 1.0
    %v1292 = vadd.f32 %v1237, 1.0
    %v1293 = vadd.f32 %v1239, 1.0
    %v1294 = vadd.f32 %v1241, 1.0
    %v1295 = vadd.f32 %v1243, 1.0
    %v1296 = vadd.f32 %v1245, 1.0
    %v1297 = vadd.f32 %v1247, 1.0
    %v1298 = vadd.f32 %v1249, 1.0
    %v1299 = vadd.f32 %v1251, 1.0
    %v1300 = vadd.f32 %v1253, 1.0
    %v1301 = vadd.f32 %v1255, 1.0
    %v1302 = vadd.f32 %v1257, 1.0
    %v1303 = vadd.f32 %v1259, 1.0
    %v1304 = vadd.f32 %v1261, 1.0
    %v1305 = vadd.f32 %v1263, 1.0
    %v1306 = vadd.f32 %v1265, 1.0
    %v1307 = vadd.f32 %v1267, 1.0
    %v1308 = vadd.f32 %v1269, 1.0
    %v1309 = vadd.f32 %v1271, 1.0
    %v1310 = vadd.f32 %v1273, 1.0
    %v1311 = vadd.f32 %v1275, 1.0
    %v1312 = vadd.f32 %v1277, 1.0
    %v1313 = vadd.f32 %v1279, 1.0
    %v1314 = vadd.f32 %v1281, 1.0
    %v1315 = vadd.f32 %v1283, 1.0
    %v1316 = vrcp.pop %v1284
    %v1317 = vmul.f32 %v1284, %v1316
    %v1318 = vsub.f32 1.0, %v1317
    %v1319 = vmul.f32 %v1316, %v1318
    %v1320 = vadd.f32 %v1316, %v1319
    %vm1321 = vweird.f32 %v1284
    %vm1322 = vweird.f32 %v1316
    %vm1323 = vmor %vm1321, %vm1322
    %v1324 = vsel %vm1323, %v1316, %v1320
    %v1325 = vand.u32 2147483647, %v1284
    %vm1326 = vcmp.eq.f32.partialorder %v1325, 8.507059e+37
    %v1327 = vand.u32 %v1284, 2147483648
    %v1328 = vor.u32 1.1754944e-38, %v1327
    %v1329 = vsel %vm1326, %v1328, %v1324
    %v1330 = vmul.f32 1.0, %v1329
    %v1331 = vrcp.pop %v1285
    %v1332 = vmul.f32 %v1285, %v1331
    %v1333 = vsub.f32 1.0, %v1332
    %v1334 = vmul.f32 %v1331, %v1333
    %v1335 = vadd.f32 %v1331, %v1334
    %vm1336 = vweird.f32 %v1285
    %vm1337 = vweird.f32 %v1331
    %vm1338 = vmor %vm1336, %vm1337
    %v1339 = vsel %vm1338, %v1331, %v1335
    %v1340 = vand.u32 2147483647, %v1285
    %vm1341 = vcmp.eq.f32.partialorder %v1340, 8.507059e+37
    %v1342 = vand.u32 %v1285, 2147483648
    %v1343 = vor.u32 1.1754944e-38, %v1342
    %v1344 = vsel %vm1341, %v1343, %v1339
    %v1345 = vmul.f32 1.0, %v1344
    %v1346 = vrcp.pop %v1286
    %v1347 = vmul.f32 %v1286, %v1346
    %v1348 = vsub.f32 1.0, %v1347
    %v1349 = vmul.f32 %v1346, %v1348
    %v1350 = vadd.f32 %v1346, %v1349
    %vm1351 = vweird.f32 %v1286
    %vm1352 = vweird.f32 %v1346
    %vm1353 = vmor %vm1351, %vm1352
    %v1354 = vsel %vm1353, %v1346, %v1350
    %v1355 = vand.u32 2147483647, %v1286
    %vm1356 = vcmp.eq.f32.partialorder %v1355, 8.507059e+37
    %v1357 = vand.u32 %v1286, 2147483648
    %v1358 = vor.u32 1.1754944e-38, %v1357
    %v1359 = vsel %vm1356, %v1358, %v1354
    %v1360 = vmul.f32 1.0, %v1359
    %v1361 = vrcp.pop %v1287
    %v1362 = vmul.f32 %v1287, %v1361
    %v1363 = vsub.f32 1.0, %v1362
    %v1364 = vmul.f32 %v1361, %v1363
    %v1365 = vadd.f32 %v1361, %v1364
    %vm1366 = vweird.f32 %v1287
    %vm1367 = vweird.f32 %v1361
    %vm1368 = vmor %vm1366, %vm1367
    %v1369 = vsel %vm1368, %v1361, %v1365
    %v1370 = vand.u32 2147483647, %v1287
    %vm1371 = vcmp.eq.f32.partialorder %v1370, 8.507059e+37
    %v1372 = vand.u32 %v1287, 2147483648
    %v1373 = vor.u32 1.1754944e-38, %v1372
    %v1374 = vsel %vm1371, %v1373, %v1369
    %v1375 = vmul.f32 1.0, %v1374
    %v1376 = vrcp.pop %v1288
    %v1377 = vmul.f32 %v1288, %v1376
    %v1378 = vsub.f32 1.0, %v1377
    %v1379 = vmul.f32 %v1376, %v1378
    %v1380 = vadd.f32 %v1376, %v1379
    %vm1381 = vweird.f32 %v1288
    %vm1382 = vweird.f32 %v1376
    %vm1383 = vmor %vm1381, %vm1382
    %v1384 = vsel %vm1383, %v1376, %v1380
    %v1385 = vand.u32 2147483647, %v1288
    %vm1386 = vcmp.eq.f32.partialorder %v1385, 8.507059e+37
    %v1387 = vand.u32 %v1288, 2147483648
    %v1388 = vor.u32 1.1754944e-38, %v1387
    %v1389 = vsel %vm1386, %v1388, %v1384
    %v1390 = vmul.f32 1.0, %v1389
    %v1391 = vrcp.pop %v1289
    %v1392 = vmul.f32 %v1289, %v1391
    %v1393 = vsub.f32 1.0, %v1392
    %v1394 = vmul.f32 %v1391, %v1393
    %v1395 = vadd.f32 %v1391, %v1394
    %vm1396 = vweird.f32 %v1289
    %vm1397 = vweird.f32 %v1391
    %vm1398 = vmor %vm1396, %vm1397
    %v1399 = vsel %vm1398, %v1391, %v1395
    %v1400 = vand.u32 2147483647, %v1289
    %vm1401 = vcmp.eq.f32.partialorder %v1400, 8.507059e+37
    %v1402 = vand.u32 %v1289, 2147483648
    %v1403 = vor.u32 1.1754944e-38, %v1402
    %v1404 = vsel %vm1401, %v1403, %v1399
    %v1405 = vmul.f32 1.0, %v1404
    %v1406 = vrcp.pop %v1290
    %v1407 = vmul.f32 %v1290, %v1406
    %v1408 = vsub.f32 1.0, %v1407
    %v1409 = vmul.f32 %v1406, %v1408
    %v1410 = vadd.f32 %v1406, %v1409
    %vm1411 = vweird.f32 %v1290
    %vm1412 = vweird.f32 %v1406
    %vm1413 = vmor %vm1411, %vm1412
    %v1414 = vsel %vm1413, %v1406, %v1410
    %v1415 = vand.u32 2147483647, %v1290
    %vm1416 = vcmp.eq.f32.partialorder %v1415, 8.507059e+37
    %v1417 = vand.u32 %v1290, 2147483648
    %v1418 = vor.u32 1.1754944e-38, %v1417
    %v1419 = vsel %vm1416, %v1418, %v1414
    %v1420 = vmul.f32 1.0, %v1419
    %v1421 = vrcp.pop %v1291
    %v1422 = vmul.f32 %v1291, %v1421
    %v1423 = vsub.f32 1.0, %v1422
    %v1424 = vmul.f32 %v1421, %v1423
    %v1425 = vadd.f32 %v1421, %v1424
    %vm1426 = vweird.f32 %v1291
    %vm1427 = vweird.f32 %v1421
    %vm1428 = vmor %vm1426, %vm1427
    %v1429 = vsel %vm1428, %v1421, %v1425
    %v1430 = vand.u32 2147483647, %v1291
    %vm1431 = vcmp.eq.f32.partialorder %v1430, 8.507059e+37
    %v1432 = vand.u32 %v1291, 2147483648
    %v1433 = vor.u32 1.1754944e-38, %v1432
    %v1434 = vsel %vm1431, %v1433, %v1429
    %v1435 = vmul.f32 1.0, %v1434
    %v1436 = vrcp.pop %v1292
    %v1437 = vmul.f32 %v1292, %v1436
    %v1438 = vsub.f32 1.0, %v1437
    %v1439 = vmul.f32 %v1436, %v1438
    %v1440 = vadd.f32 %v1436, %v1439
    %vm1441 = vweird.f32 %v1292
    %vm1442 = vweird.f32 %v1436
    %vm1443 = vmor %vm1441, %vm1442
    %v1444 = vsel %vm1443, %v1436, %v1440
    %v1445 = vand.u32 2147483647, %v1292
    %vm1446 = vcmp.eq.f32.partialorder %v1445, 8.507059e+37
    %v1447 = vand.u32 %v1292, 2147483648
    %v1448 = vor.u32 1.1754944e-38, %v1447
    %v1449 = vsel %vm1446, %v1448, %v1444
    %v1450 = vmul.f32 1.0, %v1449
    %v1451 = vrcp.pop %v1293
    %v1452 = vmul.f32 %v1293, %v1451
    %v1453 = vsub.f32 1.0, %v1452
    %v1454 = vmul.f32 %v1451, %v1453
    %v1455 = vadd.f32 %v1451, %v1454
    %vm1456 = vweird.f32 %v1293
    %vm1457 = vweird.f32 %v1451
    %vm1458 = vmor %vm1456, %vm1457
    %v1459 = vsel %vm1458, %v1451, %v1455
    %v1460 = vand.u32 2147483647, %v1293
    %vm1461 = vcmp.eq.f32.partialorder %v1460, 8.507059e+37
    %v1462 = vand.u32 %v1293, 2147483648
    %v1463 = vor.u32 1.1754944e-38, %v1462
    %v1464 = vsel %vm1461, %v1463, %v1459
    %v1465 = vmul.f32 1.0, %v1464
    %v1466 = vrcp.pop %v1294
    %v1467 = vmul.f32 %v1294, %v1466
    %v1468 = vsub.f32 1.0, %v1467
    %v1469 = vmul.f32 %v1466, %v1468
    %v1470 = vadd.f32 %v1466, %v1469
    %vm1471 = vweird.f32 %v1294
    %vm1472 = vweird.f32 %v1466
    %vm1473 = vmor %vm1471, %vm1472
    %v1474 = vsel %vm1473, %v1466, %v1470
    %v1475 = vand.u32 2147483647, %v1294
    %vm1476 = vcmp.eq.f32.partialorder %v1475, 8.507059e+37
    %v1477 = vand.u32 %v1294, 2147483648
    %v1478 = vor.u32 1.1754944e-38, %v1477
    %v1479 = vsel %vm1476, %v1478, %v1474
    %v1480 = vmul.f32 1.0, %v1479
    %v1481 = vrcp.pop %v1295
    %v1482 = vmul.f32 %v1295, %v1481
    %v1483 = vsub.f32 1.0, %v1482
    %v1484 = vmul.f32 %v1481, %v1483
    %v1485 = vadd.f32 %v1481, %v1484
    %vm1486 = vweird.f32 %v1295
    %vm1487 = vweird.f32 %v1481
    %vm1488 = vmor %vm1486, %vm1487
    %v1489 = vsel %vm1488, %v1481, %v1485
    %v1490 = vand.u32 2147483647, %v1295
    %vm1491 = vcmp.eq.f32.partialorder %v1490, 8.507059e+37
    %v1492 = vand.u32 %v1295, 2147483648
    %v1493 = vor.u32 1.1754944e-38, %v1492
    %v1494 = vsel %vm1491, %v1493, %v1489
    %v1495 = vmul.f32 1.0, %v1494
    %v1496 = vrcp.pop %v1296
    %v1497 = vmul.f32 %v1296, %v1496
    %v1498 = vsub.f32 1.0, %v1497
    %v1499 = vmul.f32 %v1496, %v1498
    %v1500 = vadd.f32 %v1496, %v1499
    %vm1501 = vweird.f32 %v1296
    %vm1502 = vweird.f32 %v1496
    %vm1503 = vmor %vm1501, %vm1502
    %v1504 = vsel %vm1503, %v1496, %v1500
    %v1505 = vand.u32 2147483647, %v1296
    %vm1506 = vcmp.eq.f32.partialorder %v1505, 8.507059e+37
    %v1507 = vand.u32 %v1296, 2147483648
    %v1508 = vor.u32 1.1754944e-38, %v1507
    %v1509 = vsel %vm1506, %v1508, %v1504
    %v1510 = vmul.f32 1.0, %v1509
    %v1511 = vrcp.pop %v1297
    %v1512 = vmul.f32 %v1297, %v1511
    %v1513 = vsub.f32 1.0, %v1512
    %v1514 = vmul.f32 %v1511, %v1513
    %v1515 = vadd.f32 %v1511, %v1514
    %vm1516 = vweird.f32 %v1297
    %vm1517 = vweird.f32 %v1511
    %vm1518 = vmor %vm1516, %vm1517
    %v1519 = vsel %vm1518, %v1511, %v1515
    %v1520 = vand.u32 2147483647, %v1297
    %vm1521 = vcmp.eq.f32.partialorder %v1520, 8.507059e+37
    %v1522 = vand.u32 %v1297, 2147483648
    %v1523 = vor.u32 1.1754944e-38, %v1522
    %v1524 = vsel %vm1521, %v1523, %v1519
    %v1525 = vmul.f32 1.0, %v1524
    %v1526 = vrcp.pop %v1298
    %v1527 = vmul.f32 %v1298, %v1526
    %v1528 = vsub.f32 1.0, %v1527
    %v1529 = vmul.f32 %v1526, %v1528
    %v1530 = vadd.f32 %v1526, %v1529
    %vm1531 = vweird.f32 %v1298
    %vm1532 = vweird.f32 %v1526
    %vm1533 = vmor %vm1531, %vm1532
    %v1534 = vsel %vm1533, %v1526, %v1530
    %v1535 = vand.u32 2147483647, %v1298
    %vm1536 = vcmp.eq.f32.partialorder %v1535, 8.507059e+37
    %v1537 = vand.u32 %v1298, 2147483648
    %v1538 = vor.u32 1.1754944e-38, %v1537
    %v1539 = vsel %vm1536, %v1538, %v1534
    %v1540 = vmul.f32 1.0, %v1539
    %v1541 = vrcp.pop %v1299
    %v1542 = vmul.f32 %v1299, %v1541
    %v1543 = vsub.f32 1.0, %v1542
    %v1544 = vmul.f32 %v1541, %v1543
    %v1545 = vadd.f32 %v1541, %v1544
    %vm1546 = vweird.f32 %v1299
    %vm1547 = vweird.f32 %v1541
    %vm1548 = vmor %vm1546, %vm1547
    %v1549 = vsel %vm1548, %v1541, %v1545
    %v1550 = vand.u32 2147483647, %v1299
    %vm1551 = vcmp.eq.f32.partialorder %v1550, 8.507059e+37
    %v1552 = vand.u32 %v1299, 2147483648
    %v1553 = vor.u32 1.1754944e-38, %v1552
    %v1554 = vsel %vm1551, %v1553, %v1549
    %v1555 = vmul.f32 1.0, %v1554
    %v1556 = vrcp.pop %v1300
    %v1557 = vmul.f32 %v1300, %v1556
    %v1558 = vsub.f32 1.0, %v1557
    %v1559 = vmul.f32 %v1556, %v1558
    %v1560 = vadd.f32 %v1556, %v1559
    %vm1561 = vweird.f32 %v1300
    %vm1562 = vweird.f32 %v1556
    %vm1563 = vmor %vm1561, %vm1562
    %v1564 = vsel %vm1563, %v1556, %v1560
    %v1565 = vand.u32 2147483647, %v1300
    %vm1566 = vcmp.eq.f32.partialorder %v1565, 8.507059e+37
    %v1567 = vand.u32 %v1300, 2147483648
    %v1568 = vor.u32 1.1754944e-38, %v1567
    %v1569 = vsel %vm1566, %v1568, %v1564
    %v1570 = vmul.f32 1.0, %v1569
    %v1571 = vrcp.pop %v1301
    %v1572 = vmul.f32 %v1301, %v1571
    %v1573 = vsub.f32 1.0, %v1572
    %v1574 = vmul.f32 %v1571, %v1573
    %v1575 = vadd.f32 %v1571, %v1574
    %vm1576 = vweird.f32 %v1301
    %vm1577 = vweird.f32 %v1571
    %vm1578 = vmor %vm1576, %vm1577
    %v1579 = vsel %vm1578, %v1571, %v1575
    %v1580 = vand.u32 2147483647, %v1301
    %vm1581 = vcmp.eq.f32.partialorder %v1580, 8.507059e+37
    %v1582 = vand.u32 %v1301, 2147483648
    %v1583 = vor.u32 1.1754944e-38, %v1582
    %v1584 = vsel %vm1581, %v1583, %v1579
    %v1585 = vmul.f32 1.0, %v1584
    %v1586 = vrcp.pop %v1302
    %v1587 = vmul.f32 %v1302, %v1586
    %v1588 = vsub.f32 1.0, %v1587
    %v1589 = vmul.f32 %v1586, %v1588
    %v1590 = vadd.f32 %v1586, %v1589
    %vm1591 = vweird.f32 %v1302
    %vm1592 = vweird.f32 %v1586
    %vm1593 = vmor %vm1591, %vm1592
    %v1594 = vsel %vm1593, %v1586, %v1590
    %v1595 = vand.u32 2147483647, %v1302
    %vm1596 = vcmp.eq.f32.partialorder %v1595, 8.507059e+37
    %v1597 = vand.u32 %v1302, 2147483648
    %v1598 = vor.u32 1.1754944e-38, %v1597
    %v1599 = vsel %vm1596, %v1598, %v1594
    %v1600 = vmul.f32 1.0, %v1599
    %v1601 = vrcp.pop %v1303
    %v1602 = vmul.f32 %v1303, %v1601
    %v1603 = vsub.f32 1.0, %v1602
    %v1604 = vmul.f32 %v1601, %v1603
    %v1605 = vadd.f32 %v1601, %v1604
    %vm1606 = vweird.f32 %v1303
    %vm1607 = vweird.f32 %v1601
    %vm1608 = vmor %vm1606, %vm1607
    %v1609 = vsel %vm1608, %v1601, %v1605
    %v1610 = vand.u32 2147483647, %v1303
    %vm1611 = vcmp.eq.f32.partialorder %v1610, 8.507059e+37
    %v1612 = vand.u32 %v1303, 2147483648
    %v1613 = vor.u32 1.1754944e-38, %v1612
    %v1614 = vsel %vm1611, %v1613, %v1609
    %v1615 = vmul.f32 1.0, %v1614
    %v1616 = vrcp.pop %v1304
    %v1617 = vmul.f32 %v1304, %v1616
    %v1618 = vsub.f32 1.0, %v1617
    %v1619 = vmul.f32 %v1616, %v1618
    %v1620 = vadd.f32 %v1616, %v1619
    %vm1621 = vweird.f32 %v1304
    %vm1622 = vweird.f32 %v1616
    %vm1623 = vmor %vm1621, %vm1622
    %v1624 = vsel %vm1623, %v1616, %v1620
    %v1625 = vand.u32 2147483647, %v1304
    %vm1626 = vcmp.eq.f32.partialorder %v1625, 8.507059e+37
    %v1627 = vand.u32 %v1304, 2147483648
    %v1628 = vor.u32 1.1754944e-38, %v1627
    %v1629 = vsel %vm1626, %v1628, %v1624
    %v1630 = vmul.f32 1.0, %v1629
    %v1631 = vrcp.pop %v1305
    %v1632 = vmul.f32 %v1305, %v1631
    %v1633 = vsub.f32 1.0, %v1632
    %v1634 = vmul.f32 %v1631, %v1633
    %v1635 = vadd.f32 %v1631, %v1634
    %vm1636 = vweird.f32 %v1305
    %vm1637 = vweird.f32 %v1631
    %vm1638 = vmor %vm1636, %vm1637
    %v1639 = vsel %vm1638, %v1631, %v1635
    %v1640 = vand.u32 2147483647, %v1305
    %vm1641 = vcmp.eq.f32.partialorder %v1640, 8.507059e+37
    %v1642 = vand.u32 %v1305, 2147483648
    %v1643 = vor.u32 1.1754944e-38, %v1642
    %v1644 = vsel %vm1641, %v1643, %v1639
    %v1645 = vmul.f32 1.0, %v1644
    %v1646 = vrcp.pop %v1306
    %v1647 = vmul.f32 %v1306, %v1646
    %v1648 = vsub.f32 1.0, %v1647
    %v1649 = vmul.f32 %v1646, %v1648
    %v1650 = vadd.f32 %v1646, %v1649
    %vm1651 = vweird.f32 %v1306
    %vm1652 = vweird.f32 %v1646
    %vm1653 = vmor %vm1651, %vm1652
    %v1654 = vsel %vm1653, %v1646, %v1650
    %v1655 = vand.u32 2147483647, %v1306
    %vm1656 = vcmp.eq.f32.partialorder %v1655, 8.507059e+37
    %v1657 = vand.u32 %v1306, 2147483648
    %v1658 = vor.u32 1.1754944e-38, %v1657
    %v1659 = vsel %vm1656, %v1658, %v1654
    %v1660 = vmul.f32 1.0, %v1659
    %v1661 = vrcp.pop %v1307
    %v1662 = vmul.f32 %v1307, %v1661
    %v1663 = vsub.f32 1.0, %v1662
    %v1664 = vmul.f32 %v1661, %v1663
    %v1665 = vadd.f32 %v1661, %v1664
    %vm1666 = vweird.f32 %v1307
    %vm1667 = vweird.f32 %v1661
    %vm1668 = vmor %vm1666, %vm1667
    %v1669 = vsel %vm1668, %v1661, %v1665
    %v1670 = vand.u32 2147483647, %v1307
    %vm1671 = vcmp.eq.f32.partialorder %v1670, 8.507059e+37
    %v1672 = vand.u32 %v1307, 2147483648
    %v1673 = vor.u32 1.1754944e-38, %v1672
    %v1674 = vsel %vm1671, %v1673, %v1669
    %v1675 = vmul.f32 1.0, %v1674
    %v1676 = vrcp.pop %v1308
    %v1677 = vmul.f32 %v1308, %v1676
    %v1678 = vsub.f32 1.0, %v1677
    %v1679 = vmul.f32 %v1676, %v1678
    %v1680 = vadd.f32 %v1676, %v1679
    %vm1681 = vweird.f32 %v1308
    %vm1682 = vweird.f32 %v1676
    %vm1683 = vmor %vm1681, %vm1682
    %v1684 = vsel %vm1683, %v1676, %v1680
    %v1685 = vand.u32 2147483647, %v1308
    %vm1686 = vcmp.eq.f32.partialorder %v1685, 8.507059e+37
    %v1687 = vand.u32 %v1308, 2147483648
    %v1688 = vor.u32 1.1754944e-38, %v1687
    %v1689 = vsel %vm1686, %v1688, %v1684
    %v1690 = vmul.f32 1.0, %v1689
    %v1691 = vrcp.pop %v1309
    %v1692 = vmul.f32 %v1309, %v1691
    %v1693 = vsub.f32 1.0, %v1692
    %v1694 = vmul.f32 %v1691, %v1693
    %v1695 = vadd.f32 %v1691, %v1694
    %vm1696 = vweird.f32 %v1309
    %vm1697 = vweird.f32 %v1691
    %vm1698 = vmor %vm1696, %vm1697
    %v1699 = vsel %vm1698, %v1691, %v1695
    %v1700 = vand.u32 2147483647, %v1309
    %vm1701 = vcmp.eq.f32.partialorder %v1700, 8.507059e+37
    %v1702 = vand.u32 %v1309, 2147483648
    %v1703 = vor.u32 1.1754944e-38, %v1702
    %v1704 = vsel %vm1701, %v1703, %v1699
    %v1705 = vmul.f32 1.0, %v1704
    %v1706 = vrcp.pop %v1310
    %v1707 = vmul.f32 %v1310, %v1706
    %v1708 = vsub.f32 1.0, %v1707
    %v1709 = vmul.f32 %v1706, %v1708
    %v1710 = vadd.f32 %v1706, %v1709
    %vm1711 = vweird.f32 %v1310
    %vm1712 = vweird.f32 %v1706
    %vm1713 = vmor %vm1711, %vm1712
    %v1714 = vsel %vm1713, %v1706, %v1710
    %v1715 = vand.u32 2147483647, %v1310
    %vm1716 = vcmp.eq.f32.partialorder %v1715, 8.507059e+37
    %v1717 = vand.u32 %v1310, 2147483648
    %v1718 = vor.u32 1.1754944e-38, %v1717
    %v1719 = vsel %vm1716, %v1718, %v1714
    %v1720 = vmul.f32 1.0, %v1719
    %v1721 = vrcp.pop %v1311
    %v1722 = vmul.f32 %v1311, %v1721
    %v1723 = vsub.f32 1.0, %v1722
    %v1724 = vmul.f32 %v1721, %v1723
    %v1725 = vadd.f32 %v1721, %v1724
    %vm1726 = vweird.f32 %v1311
    %vm1727 = vweird.f32 %v1721
    %vm1728 = vmor %vm1726, %vm1727
    %v1729 = vsel %vm1728, %v1721, %v1725
    %v1730 = vand.u32 2147483647, %v1311
    %vm1731 = vcmp.eq.f32.partialorder %v1730, 8.507059e+37
    %v1732 = vand.u32 %v1311, 2147483648
    %v1733 = vor.u32 1.1754944e-38, %v1732
    %v1734 = vsel %vm1731, %v1733, %v1729
    %v1735 = vmul.f32 1.0, %v1734
    %v1736 = vrcp.pop %v1312
    %v1737 = vmul.f32 %v1312, %v1736
    %v1738 = vsub.f32 1.0, %v1737
    %v1739 = vmul.f32 %v1736, %v1738
    %v1740 = vadd.f32 %v1736, %v1739
    %vm1741 = vweird.f32 %v1312
    %vm1742 = vweird.f32 %v1736
    %vm1743 = vmor %vm1741, %vm1742
    %v1744 = vsel %vm1743, %v1736, %v1740
    %v1745 = vand.u32 2147483647, %v1312
    %vm1746 = vcmp.eq.f32.partialorder %v1745, 8.507059e+37
    %v1747 = vand.u32 %v1312, 2147483648
    %v1748 = vor.u32 1.1754944e-38, %v1747
    %v1749 = vsel %vm1746, %v1748, %v1744
    %v1750 = vmul.f32 1.0, %v1749
    %v1751 = vrcp.pop %v1313
    %v1752 = vmul.f32 %v1313, %v1751
    %v1753 = vsub.f32 1.0, %v1752
    %v1754 = vmul.f32 %v1751, %v1753
    %v1755 = vadd.f32 %v1751, %v1754
    %vm1756 = vweird.f32 %v1313
    %vm1757 = vweird.f32 %v1751
    %vm1758 = vmor %vm1756, %vm1757
    %v1759 = vsel %vm1758, %v1751, %v1755
    %v1760 = vand.u32 2147483647, %v1313
    %vm1761 = vcmp.eq.f32.partialorder %v1760, 8.507059e+37
    %v1762 = vand.u32 %v1313, 2147483648
    %v1763 = vor.u32 1.1754944e-38, %v1762
    %v1764 = vsel %vm1761, %v1763, %v1759
    %v1765 = vmul.f32 1.0, %v1764
    %v1766 = vrcp.pop %v1314
    %v1767 = vmul.f32 %v1314, %v1766
    %v1768 = vsub.f32 1.0, %v1767
    %v1769 = vmul.f32 %v1766, %v1768
    %v1770 = vadd.f32 %v1766, %v1769
    %vm1771 = vweird.f32 %v1314
    %vm1772 = vweird.f32 %v1766
    %vm1773 = vmor %vm1771, %vm1772
    %v1774 = vsel %vm1773, %v1766, %v1770
    %v1775 = vand.u32 2147483647, %v1314
    %vm1776 = vcmp.eq.f32.partialorder %v1775, 8.507059e+37
    %v1777 = vand.u32 %v1314, 2147483648
    %v1778 = vor.u32 1.1754944e-38, %v1777
    %v1779 = vsel %vm1776, %v1778, %v1774
    %v1780 = vmul.f32 1.0, %v1779
    %v1781 = vrcp.pop %v1315
    %v1782 = vmul.f32 %v1315, %v1781
    %v1783 = vsub.f32 1.0, %v1782
    %v1784 = vmul.f32 %v1781, %v1783
    %v1785 = vadd.f32 %v1781, %v1784
    %vm1786 = vweird.f32 %v1315
    %vm1787 = vweird.f32 %v1781
    %vm1788 = vmor %vm1786, %vm1787
    %v1789 = vsel %vm1788, %v1781, %v1785
    %v1790 = vand.u32 2147483647, %v1315
    %vm1791 = vcmp.eq.f32.partialorder %v1790, 8.507059e+37
    %v1792 = vand.u32 %v1315, 2147483648
    %v1793 = vor.u32 1.1754944e-38, %v1792
    %v1794 = vsel %vm1791, %v1793, %v1789
    %v1795 = vmul.f32 1.0, %v1794
    %v1796 = vmul.f32 %v1109, %v1330
    %v1797 = vmul.f32 %v1111, %v1345
    %v1798 = vmul.f32 %v1114, %v1360
    %v1799 = vmul.f32 %v1116, %v1375
    %v1800 = vmul.f32 %v1119, %v1390
    %v1801 = vmul.f32 %v1121, %v1405
    %v1802 = vmul.f32 %v1124, %v1420
    %v1803 = vmul.f32 %v1126, %v1435
    %v1804 = vmul.f32 %v1129, %v1450
    %v1805 = vmul.f32 %v1131, %v1465
    %v1806 = vmul.f32 %v1134, %v1480
    %v1807 = vmul.f32 %v1136, %v1495
    %v1808 = vmul.f32 %v1139, %v1510
    %v1809 = vmul.f32 %v1141, %v1525
    %v1810 = vmul.f32 %v1144, %v1540
    %v1811 = vmul.f32 %v1146, %v1555
    %v1812 = vmul.f32 %v1149, %v1570
    %v1813 = vmul.f32 %v1151, %v1585
    %v1814 = vmul.f32 %v1154, %v1600
    %v1815 = vmul.f32 %v1156, %v1615
    %v1816 = vmul.f32 %v1159, %v1630
    %v1817 = vmul.f32 %v1161, %v1645
    %v1818 = vmul.f32 %v1164, %v1660
    %v1819 = vmul.f32 %v1166, %v1675
    %v1820 = vmul.f32 %v1169, %v1690
    %v1821 = vmul.f32 %v1171, %v1705
    %v1822 = vmul.f32 %v1174, %v1720
    %v1823 = vmul.f32 %v1176, %v1735
    %v1824 = vmul.f32 %v1179, %v1750
    %v1825 = vmul.f32 %v1181, %v1765
    %v1826 = vmul.f32 %v1184, %v1780
    %v1827 = vmul.f32 %v1186, %v1795
    %v1828 = vpack.c.bf16 %v1797, %v1796
    %v1829 = vpack.c.bf16 %v1799, %v1798
    %v1830 = vpack.c.bf16 %v1801, %v1800
    %v1831 = vpack.c.bf16 %v1803, %v1802
    %v1832 = vpack.c.bf16 %v1805, %v1804
    %v1833 = vpack.c.bf16 %v1807, %v1806
    %v1834 = vpack.c.bf16 %v1809, %v1808
    %v1835 = vpack.c.bf16 %v1811, %v1810
    %v1836 = vpack.c.bf16 %v1813, %v1812
    %v1837 = vpack.c.bf16 %v1815, %v1814
    %v1838 = vpack.c.bf16 %v1817, %v1816
    %v1839 = vpack.c.bf16 %v1819, %v1818
    %v1840 = vpack.c.bf16 %v1821, %v1820
    %v1841 = vpack.c.bf16 %v1823, %v1822
    %v1842 = vpack.c.bf16 %v1825, %v1824
    %v1843 = vpack.c.bf16 %v1827, %v1826
    %v1844 = vld [vmem:[#allocation8] sm:$0xf]
    %v1845 = vld [vmem:[#allocation8 + $0x4] sm:$0xf]
    %v1846 = vld [vmem:[#allocation8 + $0x8] sm:$0xf]
    %v1847 = vld [vmem:[#allocation8 + $0xc] sm:$0xf]
    %v1848 = vld [vmem:[#allocation8 + $0x10] sm:$0xf]
    %v1849 = vld [vmem:[#allocation8 + $0x14] sm:$0xf]
    %v1850 = vld [vmem:[#allocation8 + $0x18] sm:$0xf]
    %v1851 = vld [vmem:[#allocation8 + $0x1c] sm:$0xf]
    %v1852 = vld [vmem:[#allocation8 + $0x20] sm:$0xf]
    %v1853 = vld [vmem:[#allocation8 + $0x24] sm:$0xf]
    %v1854 = vld [vmem:[#allocation8 + $0x28] sm:$0xf]
    %v1855 = vld [vmem:[#allocation8 + $0x2c] sm:$0xf]
    %v1856 = vld [vmem:[#allocation8 + $0x30] sm:$0xf]
    %v1857 = vld [vmem:[#allocation8 + $0x34] sm:$0xf]
    %v1858 = vld [vmem:[#allocation8 + $0x38] sm:$0xf]
    %v1859 = vld [vmem:[#allocation8 + $0x3c] sm:$0xf]
    %v1860 = vld [vmem:[%s6] sm:$0x1]
    %v1862 = vperm.slane %v1860, 0
    %v1880 = vunpack.c.l.b16 %v1844
    %v1881 = vunpack.c.l.b16 %v1845
    %v1882 = vunpack.c.l.b16 %v1846
    %v1883 = vunpack.c.l.b16 %v1847
    %v1884 = vunpack.c.l.b16 %v1848
    %v1885 = vunpack.c.l.b16 %v1849
    %v1886 = vunpack.c.l.b16 %v1850
    %v1887 = vunpack.c.l.b16 %v1851
    %v1888 = vunpack.c.l.b16 %v1852
    %v1889 = vunpack.c.l.b16 %v1853
    %v1890 = vunpack.c.l.b16 %v1854
    %v1891 = vunpack.c.l.b16 %v1855
    %v1892 = vunpack.c.l.b16 %v1856
    %v1893 = vunpack.c.l.b16 %v1857
    %v1894 = vunpack.c.l.b16 %v1858
    %v1895 = vunpack.c.l.b16 %v1859
    %v1896 = vpack.c.b16 %v1881, %v1880
    %v1897 = vpack.c.b16 %v1883, %v1882
    %v1898 = vpack.c.b16 %v1885, %v1884
    %v1899 = vpack.c.b16 %v1887, %v1886
    %v1900 = vpack.c.b16 %v1889, %v1888
    %v1901 = vpack.c.b16 %v1891, %v1890
    %v1902 = vpack.c.b16 %v1893, %v1892
    %v1903 = vpack.c.b16 %v1895, %v1894
    %1912 = vmatpush.bf16.msra.mxu0 %v1903
    %1913 = vmatpush.bf16.msra.mxu0 %v1902
    %1914 = vmatpush.bf16.msra.mxu0 %v1901
    %1915 = vmatpush.bf16.msra.mxu0 %v1900
    %1916 = vmatpush.bf16.msra.mxu0 %v1899
    %1917 = vmatpush.bf16.msra.mxu0 %v1898
    %1918 = vmatpush.bf16.msra.mxu0 %v1897
    %1919 = vmatpush.bf16.msra.mxu0 %v1896
    %1920 = vmatmul.bf16.gmra.mxu0 %v1828
    %v1921 = vpop.f32.mrf.mxu0
    %v1922 = vadd.f32 %v1862, %v1921
    %v1923 = vpop.f32.mrf.mxu0
    %v1924 = vadd.f32 %v1862, %v1923
    %1925 = vmatmul.bf16.gmra.mxu0 %v1829
    %v1926 = vpop.f32.mrf.mxu0
    %v1927 = vadd.f32 %v1862, %v1926
    %v1928 = vpop.f32.mrf.mxu0
    %v1929 = vadd.f32 %v1862, %v1928
    %1930 = vmatmul.bf16.gmra.mxu0 %v1830
    %v1931 = vpop.f32.mrf.mxu0
    %v1932 = vadd.f32 %v1862, %v1931
    %v1933 = vpop.f32.mrf.mxu0
    %v1934 = vadd.f32 %v1862, %v1933
    %1935 = vmatmul.bf16.gmra.mxu0 %v1831
    %v1936 = vpop.f32.mrf.mxu0
    %v1937 = vadd.f32 %v1862, %v1936
    %v1938 = vpop.f32.mrf.mxu0
    %v1939 = vadd.f32 %v1862, %v1938
    %1940 = vmatmul.bf16.gmra.mxu0 %v1832
    %v1941 = vpop.f32.mrf.mxu0
    %v1942 = vadd.f32 %v1862, %v1941
    %v1943 = vpop.f32.mrf.mxu0
    %v1944 = vadd.f32 %v1862, %v1943
    %1945 = vmatmul.bf16.gmra.mxu0 %v1833
    %v1946 = vpop.f32.mrf.mxu0
    %v1947 = vadd.f32 %v1862, %v1946
    %v1948 = vpop.f32.mrf.mxu0
    %v1949 = vadd.f32 %v1862, %v1948
    %1950 = vmatmul.bf16.gmra.mxu0 %v1834
    %v1951 = vpop.f32.mrf.mxu0
    %v1952 = vadd.f32 %v1862, %v1951
    %v1953 = vpop.f32.mrf.mxu0
    %v1954 = vadd.f32 %v1862, %v1953
    %1955 = vmatmul.bf16.gmra.mxu0 %v1835
    %v1956 = vpop.f32.mrf.mxu0
    %v1957 = vadd.f32 %v1862, %v1956
    %v1958 = vpop.f32.mrf.mxu0
    %v1959 = vadd.f32 %v1862, %v1958
    %1960 = vmatmul.bf16.gmra.mxu0 %v1836
    %v1961 = vpop.f32.mrf.mxu0
    %v1962 = vadd.f32 %v1862, %v1961
    %v1963 = vpop.f32.mrf.mxu0
    %v1964 = vadd.f32 %v1862, %v1963
    %1965 = vmatmul.bf16.gmra.mxu0 %v1837
    %v1966 = vpop.f32.mrf.mxu0
    %v1967 = vadd.f32 %v1862, %v1966
    %v1968 = vpop.f32.mrf.mxu0
    %v1969 = vadd.f32 %v1862, %v1968
    %1970 = vmatmul.bf16.gmra.mxu0 %v1838
    %v1971 = vpop.f32.mrf.mxu0
    %v1972 = vadd.f32 %v1862, %v1971
    %v1973 = vpop.f32.mrf.mxu0
    %v1974 = vadd.f32 %v1862, %v1973
    %1975 = vmatmul.bf16.gmra.mxu0 %v1839
    %v1976 = vpop.f32.mrf.mxu0
    %v1977 = vadd.f32 %v1862, %v1976
    %v1978 = vpop.f32.mrf.mxu0
    %v1979 = vadd.f32 %v1862, %v1978
    %1980 = vmatmul.bf16.gmra.mxu0 %v1840
    %v1981 = vpop.f32.mrf.mxu0
    %v1982 = vadd.f32 %v1862, %v1981
    %v1983 = vpop.f32.mrf.mxu0
    %v1984 = vadd.f32 %v1862, %v1983
    %1985 = vmatmul.bf16.gmra.mxu0 %v1841
    %v1986 = vpop.f32.mrf.mxu0
    %v1987 = vadd.f32 %v1862, %v1986
    %v1988 = vpop.f32.mrf.mxu0
    %v1989 = vadd.f32 %v1862, %v1988
    %1990 = vmatmul.bf16.gmra.mxu0 %v1842
    %v1991 = vpop.f32.mrf.mxu0
    %v1992 = vadd.f32 %v1862, %v1991
    %v1993 = vpop.f32.mrf.mxu0
    %v1994 = vadd.f32 %v1862, %v1993
    %1995 = vmatmul.bf16.gmra.mxu0 %v1843
    %v1996 = vpop.f32.mrf.mxu0
    %v1997 = vadd.f32 %v1862, %v1996
    %v1998 = vpop.f32.mrf.mxu0
    %v1999 = vadd.f32 %v1862, %v1998
    %2000 = vdwg.mxu0
    %2001 = vst [vmem:[#allocation10] sm:$0xff] %v1922
    %2002 = vst [vmem:[#allocation10 + $0x8] sm:$0xff] %v1924
    %2003 = vst [vmem:[#allocation10 + $0x10] sm:$0xff] %v1927
    %2004 = vst [vmem:[#allocation10 + $0x18] sm:$0xff] %v1929
    %2005 = vst [vmem:[#allocation10 + $0x20] sm:$0xff] %v1932
    %2006 = vst [vmem:[#allocation10 + $0x28] sm:$0xff] %v1934
    %2007 = vst [vmem:[#allocation10 + $0x30] sm:$0xff] %v1937
    %2008 = vst [vmem:[#allocation10 + $0x38] sm:$0xff] %v1939
    %2009 = vst [vmem:[#allocation10 + $0x40] sm:$0xff] %v1942
    %2010 = vst [vmem:[#allocation10 + $0x48] sm:$0xff] %v1944
    %2011 = vst [vmem:[#allocation10 + $0x50] sm:$0xff] %v1947
    %2012 = vst [vmem:[#allocation10 + $0x58] sm:$0xff] %v1949
    %2013 = vst [vmem:[#allocation10 + $0x60] sm:$0xff] %v1952
    %2014 = vst [vmem:[#allocation10 + $0x68] sm:$0xff] %v1954
    %2015 = vst [vmem:[#allocation10 + $0x70] sm:$0xff] %v1957
    %2016 = vst [vmem:[#allocation10 + $0x78] sm:$0xff] %v1959
    %2017 = vst [vmem:[#allocation10 + $0x80] sm:$0xff] %v1962
    %2018 = vst [vmem:[#allocation10 + $0x88] sm:$0xff] %v1964
    %2019 = vst [vmem:[#allocation10 + $0x90] sm:$0xff] %v1967
    %2020 = vst [vmem:[#allocation10 + $0x98] sm:$0xff] %v1969
    %2021 = vst [vmem:[#allocation10 + $0xa0] sm:$0xff] %v1972
    %2022 = vst [vmem:[#allocation10 + $0xa8] sm:$0xff] %v1974
    %2023 = vst [vmem:[#allocation10 + $0xb0] sm:$0xff] %v1977
    %2024 = vst [vmem:[#allocation10 + $0xb8] sm:$0xff] %v1979
    %2025 = vst [vmem:[#allocation10 + $0xc0] sm:$0xff] %v1982
    %2026 = vst [vmem:[#allocation10 + $0xc8] sm:$0xff] %v1984
    %2027 = vst [vmem:[#allocation10 + $0xd0] sm:$0xff] %v1987
    %2028 = vst [vmem:[#allocation10 + $0xd8] sm:$0xff] %v1989
    %2029 = vst [vmem:[#allocation10 + $0xe0] sm:$0xff] %v1992
    %2030 = vst [vmem:[#allocation10 + $0xe8] sm:$0xff] %v1994
    %2031 = vst [vmem:[#allocation10 + $0xf0] sm:$0xff] %v1997
    %2032 = vst [vmem:[#allocation10 + $0xf8] sm:$0xff] %v1999
    // Predicated region
    $region46: #{tpu_custom_call.1} parent=1 // pred_check
      _
    $region47: #{tpu_custom_call.1} parent=1 // pred_check_branch
      %2034 = sbr.rel (0) target = $region49
    $region48: #{tpu_custom_call.1} parent=1 // pred_region
      %2036 = vsyncadd [#allocation4], 0
      %s2037 = sshll.u32 [#allocation10], 4
      %s2038 = int_to_ptr.vmem [resolvable:$true] %s2037
      %s2039 = sshll.u32 %s7, 4
      %s2040 = int_to_ptr.hbm [resolvable:$true] %s2039
      %2045 = dma.vmem_to_hbm [thread:$0]  %s2038, 4096, %s2040, [#allocation4], 128, 128, 8
    $region49: #{tpu_custom_call.1} parent=1 // pred_fallthru
      _
    // Predicated region
    $region50: #{tpu_custom_call.1} parent=1 // pred_check
      _
    $region51: #{tpu_custom_call.1} parent=1 // pred_check_branch
      %2047 = sbr.rel (0) target = $region53
    $region52: #{tpu_custom_call.1} parent=1 // pred_region
      %2049 = dma.done [#allocation4], 4096
    $region53: #{tpu_custom_call.1} parent=1 // pred_fallthru
      _
    %2050 = vsyncpa [#allocation3], 1
    %2051 = vsyncpa [#allocation6], 1
    %2052 = vsyncpa [#allocation9], 1
    %2053 = vsyncpa [#allocation4], 1

</llo_original>
